<compile_context>
chip_gen: v7x
topology: tpu7x:2x2x1
jax: 0.10.0
libtpu: 0.0.40
codegen_flags: <defaults>
</compile_context>

<pallas_src>
import jax
import jax.numpy as jnp
from jax.experimental import pallas as pl
from jax.experimental.pallas import tpu as pltpu

BN_EPS = 1e-5
# (in_features, out_features) of the 5 Linear layers (PyTorch spec).
LAYER_DIMS = [(128, 512), (512, 256), (256, 128), (128, 64), (64, 2)]
# Lane-padded dims used inside the kernel (zero rows/columns are numerically inert).
PADDED_DIMS = [(128, 512), (512, 256), (256, 128), (128, 128), (128, 128)]
OUT_FEATURES = 2
LANE = 128


def _round_up(n, m):
    return ((n + m - 1) // m) * m


def _choose_batch_tile(batch, tb):
    """Pick a batch tile: multiple of 8, divides padded batch, >=2 grid steps."""
    tb = max(8, min(_round_up(tb, 8), _round_up(batch, 8)))
    b_pad = _round_up(batch, tb)
    # Guarantee at least 2 grid steps when there is enough batch to split, so
    # dimension_semantics=("parallel",) shards across both v7x TensorCores.
    if b_pad // tb < 2 and batch > 8:
        tb = _round_up(b_pad // 2, 8)
        b_pad = _round_up(batch, tb)
    return tb, b_pad


def mlp_kernel(x_ref,
               w1, b1, w2, b2, w3, b3, w4, b4, w5, b5,
               o_ref):
    """Fused 5-layer MLP tile: bf16 matmuls (f32 accumulate) + f32 bias/ReLU,
    activations carried between layers in bf16, bf16 output store."""
    h = x_ref[...].astype(jnp.bfloat16)  # (TB, 128)

    h = jnp.maximum(
        jnp.dot(h, w1[...], preferred_element_type=jnp.float32) + b1[...],
        0.0).astype(jnp.bfloat16)
    h = jnp.maximum(
        jnp.dot(h, w2[...], preferred_element_type=jnp.float32) + b2[...],
        0.0).astype(jnp.bfloat16)
    h = jnp.maximum(
        jnp.dot(h, w3[...], preferred_element_type=jnp.float32) + b3[...],
        0.0).astype(jnp.bfloat16)
    h = jnp.maximum(
        jnp.dot(h, w4[...], preferred_element_type=jnp.float32) + b4[...],
        0.0).astype(jnp.bfloat16)
    # fc5 logits (columns >= 2 are zero-padded; sliced off in the wrapper).
    o_ref[...] = (
        jnp.dot(h, w5[...], preferred_element_type=jnp.float32) + b5[...]
    ).astype(o_ref.dtype)


def init_torch_like_params(key):
    """PyTorch-default Linear init + nontrivial BatchNorm running statistics."""
    lin = []
    for (fan_in, fan_out) in LAYER_DIMS:
        key, kw, kb = jax.random.split(key, 3)
        bound = 1.0 / jnp.sqrt(jnp.float32(fan_in))
        w = jax.random.uniform(kw, (fan_in, fan_out), jnp.float32, -bound, bound)
        b = jax.random.uniform(kb, (1, fan_out), jnp.float32, -bound, bound)
        lin.append((w, b))

    bn = []
    for (_, fan_out) in LAYER_DIMS[:4]:
        key, kg, kbe, km, kv = jax.random.split(key, 5)
        gamma = jax.random.uniform(kg, (1, fan_out), jnp.float32, 0.5, 1.5)
        beta = jax.random.uniform(kbe, (1, fan_out), jnp.float32, -0.5, 0.5)
        mean = jax.random.uniform(km, (1, fan_out), jnp.float32, -0.5, 0.5)
        var = jax.random.uniform(kv, (1, fan_out), jnp.float32, 0.5, 1.5)
        bn.append((gamma, beta, mean, var))
    return lin, bn


def fold_and_pad_params(lin, bn):
    """Fold BN (running stats) into Linear in f32, pad tail layers to 128
    lanes, then cast weights to bf16 (biases stay f32)."""
    fused = []
    for i, (w, b) in enumerate(lin):
        if i < 4:
            gamma, beta, mean, var = bn[i]
            scale = gamma / jnp.sqrt(var + BN_EPS)     # (1, out)
            shift = beta - mean * scale
            w = w * scale                              # column-wise fold
            b = b * scale + shift
        fi, fo = w.shape
        fi_p, fo_p = PADDED_DIMS[i]
        w = jnp.pad(w, ((0, fi_p - fi), (0, fo_p - fo)))
        b = jnp.pad(b, ((0, 0), (0, fo_p - fo)))
        fused.append((w.astype(jnp.bfloat16), b.astype(jnp.float32)))
    return fused


def improved_face_cnn_forward(x, fused_params, *, tb=2048):
    """Batch-tiled fused forward. Returns (B, 2) f32 logits."""
    B, F = x.shape
    assert F == LANE
    tb, b_pad = _choose_batch_tile(B, tb)
    if b_pad != B:
        x = jnp.pad(x, ((0, b_pad - B), (0, 0)))

    flat = [x]
    for (w, b) in fused_params:
        flat += [w, b]

    def resident_spec(arr):
        # Constant block index -> stays VMEM-resident across the batch grid.
        return pl.BlockSpec(arr.shape, lambda i: (0, 0))

    in_specs = [pl.BlockSpec((tb, LANE), lambda i: (i, 0))]
    in_specs += [resident_spec(a) for a in flat[1:]]

    x_bytes = int(x.size) * x.dtype.itemsize
    flops = 2 * b_pad * sum(fi * fo for fi, fo in PADDED_DIMS)
    bytes_accessed = (
        sum(int(w.size) * 2 + int(b.size) * 4 for w, b in fused_params)
        + x_bytes + b_pad * LANE * 2)  # bf16 output slab

    out = pl.pallas_call(
        mlp_kernel,
        out_shape=jax.ShapeDtypeStruct((b_pad, LANE), jnp.bfloat16),
        grid=(b_pad // tb,),
        in_specs=in_specs,
        out_specs=pl.BlockSpec((tb, LANE), lambda i: (i, 0)),
        compiler_params=pltpu.CompilerParams(
            dimension_semantics=("parallel",),
            vmem_limit_bytes=32 * 1024 * 1024),
        cost_estimate=pl.CostEstimate(
            flops=flops, transcendentals=0, bytes_accessed=bytes_accessed),
    )(*flat)
    return out[:B, :OUT_FEATURES].astype(jnp.float32)


def reference_forward_bf16(x, fused_params):
    """Reference mirroring the kernel's arithmetic (bf16 activations/weights,
    f32 accumulate, bf16 output quantization)."""
    h = x.astype(jnp.bfloat16)
    for i in range(4):
        w, b = fused_params[i]
        h = jnp.maximum(
            jnp.dot(h, w, preferred_element_type=jnp.float32) + b,
            0.0).astype(jnp.bfloat16)
    w5, b5 = fused_params[4]
    out = (jnp.dot(h, w5, preferred_element_type=jnp.float32) + b5
           ).astype(jnp.bfloat16)
    return out[:, :OUT_FEATURES].astype(jnp.float32)


def reference_forward_f32(x, lin, bn):
    """True eval-mode module semantics in f32 (Linear -> BN(running) -> ReLU)."""
    h = x
    for i in range(4):
        w, b = lin[i]
        gamma, beta, mean, var = bn[i]
        h = h @ w + b
        h = (h - mean) / jnp.sqrt(var + BN_EPS) * gamma + beta
        h = jnp.maximum(h, 0.0)
    w5, b5 = lin[4]
    return h @ w5 + b5


if __name__ == "__main__":
    key = jax.random.PRNGKey(0)
    key, kx = jax.random.split(key)
    B = 40
    x = jax.random.normal(kx, (B, 128), jnp.float32)

    lin, bn = init_torch_like_params(key)
    fused = fold_and_pad_params(lin, bn)

    # Default tb=2048 clamps to the small batch and auto-splits into 2 tiles
    # (tb=24, b_pad=48, grid=2): exercises row padding + the megacore split.
    out = improved_face_cnn_forward(x, fused)
    out = jax.block_until_ready(out)
    assert out.shape == (B, OUT_FEATURES)

    # 1) Strict check against a reference with identical bf16 rounding.
    ref_bf16 = reference_forward_bf16(x, fused)
    assert jnp.allclose(out, ref_bf16, atol=5e-2, rtol=5e-2), (
        "kernel vs bf16-mirror reference mismatch")

    # 2) Semantics check against the full-f32 unfolded Linear+BN reference
    #    (nontrivial running stats), loosened for bf16 weight/activation precision.
    ref_f32 = reference_forward_f32(x, lin, bn)
    assert jnp.allclose(out, ref_f32, atol=2e-1, rtol=2e-1), (
        "kernel vs f32 eval-mode reference mismatch")

    print("KERNEL_OK")
</pallas_src>

<mosaic_0001>
module attributes {stable_mosaic.version = 11 : i64} {
  func.func @mlp_kernel(%arg0: i32, %arg1: memref<24x128xf32, #tpu.memory_space<vmem>>, %arg2: memref<128x512xbf16, #tpu.memory_space<vmem>>, %arg3: memref<1x512xf32, #tpu.memory_space<vmem>>, %arg4: memref<512x256xbf16, #tpu.memory_space<vmem>>, %arg5: memref<1x256xf32, #tpu.memory_space<vmem>>, %arg6: memref<256x128xbf16, #tpu.memory_space<vmem>>, %arg7: memref<1x128xf32, #tpu.memory_space<vmem>>, %arg8: memref<128x128xbf16, #tpu.memory_space<vmem>>, %arg9: memref<1x128xf32, #tpu.memory_space<vmem>>, %arg10: memref<128x128xbf16, #tpu.memory_space<vmem>>, %arg11: memref<1x128xf32, #tpu.memory_space<vmem>>, %arg12: memref<24x128xbf16, #tpu.memory_space<vmem>>) attributes {dimension_semantics = [#tpu.dimension_semantics<parallel>], iteration_bounds = array<i64: 2>, scalar_prefetch = 0 : i64, scratch_operands = 0 : i64, tpu.core_type = #tpu.core_type<tc>, window_params = [{transform_indices = @transform_0, window_bounds = array<i64: 24, 128>}, {pipeline_mode = #tpu.pipeline_mode<synchronous>, transform_indices = @transform_1, window_bounds = array<i64: 128, 512>}, {pipeline_mode = #tpu.pipeline_mode<synchronous>, transform_indices = @transform_2, window_bounds = array<i64: 1, 512>}, {pipeline_mode = #tpu.pipeline_mode<synchronous>, transform_indices = @transform_3, window_bounds = array<i64: 512, 256>}, {pipeline_mode = #tpu.pipeline_mode<synchronous>, transform_indices = @transform_4, window_bounds = array<i64: 1, 256>}, {pipeline_mode = #tpu.pipeline_mode<synchronous>, transform_indices = @transform_5, window_bounds = array<i64: 256, 128>}, {pipeline_mode = #tpu.pipeline_mode<synchronous>, transform_indices = @transform_6, window_bounds = array<i64: 1, 128>}, {pipeline_mode = #tpu.pipeline_mode<synchronous>, transform_indices = @transform_7, window_bounds = array<i64: 128, 128>}, {pipeline_mode = #tpu.pipeline_mode<synchronous>, transform_indices = @transform_8, window_bounds = array<i64: 1, 128>}, {pipeline_mode = #tpu.pipeline_mode<synchronous>, transform_indices = @transform_9, window_bounds = array<i64: 128, 128>}, {pipeline_mode = #tpu.pipeline_mode<synchronous>, transform_indices = @transform_10, window_bounds = array<i64: 1, 128>}, {transform_indices = @transform_11, window_bounds = array<i64: 24, 128>}]} {
    %c0 = arith.constant 0 : index
    %c0_0 = arith.constant 0 : index
    %0 = vector.load %arg1[%c0, %c0_0] : memref<24x128xf32, #tpu.memory_space<vmem>>, vector<24x128xf32>
    %1 = arith.truncf %0 : vector<24x128xf32> to vector<24x128xbf16>
    %c0_1 = arith.constant 0 : index
    %c0_2 = arith.constant 0 : index
    %2 = vector.load %arg2[%c0_1, %c0_2] : memref<128x512xbf16, #tpu.memory_space<vmem>>, vector<128x512xbf16>
    %cst = arith.constant dense<0.000000e+00> : vector<24x512xf32>
    %3 = tpu.matmul %1, %2, %cst {dimension_numbers = #tpu.dot_dimension_numbers<[1], [0], [0], [1], [0, 0, 1, 1], [], []>} : vector<24x128xbf16>, vector<128x512xbf16>, vector<24x512xf32> -> vector<24x512xf32>
    %c0_3 = arith.constant 0 : index
    %c0_4 = arith.constant 0 : index
    %4 = vector.load %arg3[%c0_3, %c0_4] : memref<1x512xf32, #tpu.memory_space<vmem>>, vector<1x512xf32>
    %5 = vector.broadcast %4 : vector<1x512xf32> to vector<24x512xf32>
    %6 = arith.addf %3, %5 : vector<24x512xf32>
    %cst_5 = arith.constant 0.000000e+00 : f32
    %7 = vector.broadcast %cst_5 : f32 to vector<24x512xf32>
    %8 = arith.maximumf %6, %7 : vector<24x512xf32>
    %9 = arith.truncf %8 : vector<24x512xf32> to vector<24x512xbf16>
    %c0_6 = arith.constant 0 : index
    %c0_7 = arith.constant 0 : index
    %10 = vector.load %arg4[%c0_6, %c0_7] : memref<512x256xbf16, #tpu.memory_space<vmem>>, vector<512x256xbf16>
    %cst_8 = arith.constant dense<0.000000e+00> : vector<24x256xf32>
    %11 = tpu.matmul %9, %10, %cst_8 {dimension_numbers = #tpu.dot_dimension_numbers<[1], [0], [0], [1], [0, 0, 1, 1], [], []>} : vector<24x512xbf16>, vector<512x256xbf16>, vector<24x256xf32> -> vector<24x256xf32>
    %c0_9 = arith.constant 0 : index
    %c0_10 = arith.constant 0 : index
    %12 = vector.load %arg5[%c0_9, %c0_10] : memref<1x256xf32, #tpu.memory_space<vmem>>, vector<1x256xf32>
    %13 = vector.broadcast %12 : vector<1x256xf32> to vector<24x256xf32>
    %14 = arith.addf %11, %13 : vector<24x256xf32>
    %cst_11 = arith.constant 0.000000e+00 : f32
    %15 = vector.broadcast %cst_11 : f32 to vector<24x256xf32>
    %16 = arith.maximumf %14, %15 : vector<24x256xf32>
    %17 = arith.truncf %16 : vector<24x256xf32> to vector<24x256xbf16>
    %c0_12 = arith.constant 0 : index
    %c0_13 = arith.constant 0 : index
    %18 = vector.load %arg6[%c0_12, %c0_13] : memref<256x128xbf16, #tpu.memory_space<vmem>>, vector<256x128xbf16>
    %cst_14 = arith.constant dense<0.000000e+00> : vector<24x128xf32>
    %19 = tpu.matmul %17, %18, %cst_14 {dimension_numbers = #tpu.dot_dimension_numbers<[1], [0], [0], [1], [0, 0, 1, 1], [], []>} : vector<24x256xbf16>, vector<256x128xbf16>, vector<24x128xf32> -> vector<24x128xf32>
    %c0_15 = arith.constant 0 : index
    %c0_16 = arith.constant 0 : index
    %20 = vector.load %arg7[%c0_15, %c0_16] : memref<1x128xf32, #tpu.memory_space<vmem>>, vector<1x128xf32>
    %21 = vector.broadcast %20 : vector<1x128xf32> to vector<24x128xf32>
    %22 = arith.addf %19, %21 : vector<24x128xf32>
    %cst_17 = arith.constant 0.000000e+00 : f32
    %23 = vector.broadcast %cst_17 : f32 to vector<24x128xf32>
    %24 = arith.maximumf %22, %23 : vector<24x128xf32>
    %25 = arith.truncf %24 : vector<24x128xf32> to vector<24x128xbf16>
    %c0_18 = arith.constant 0 : index
    %c0_19 = arith.constant 0 : index
    %26 = vector.load %arg8[%c0_18, %c0_19] : memref<128x128xbf16, #tpu.memory_space<vmem>>, vector<128x128xbf16>
    %cst_20 = arith.constant dense<0.000000e+00> : vector<24x128xf32>
    %27 = tpu.matmul %25, %26, %cst_20 {dimension_numbers = #tpu.dot_dimension_numbers<[1], [0], [0], [1], [0, 0, 1, 1], [], []>} : vector<24x128xbf16>, vector<128x128xbf16>, vector<24x128xf32> -> vector<24x128xf32>
    %c0_21 = arith.constant 0 : index
    %c0_22 = arith.constant 0 : index
    %28 = vector.load %arg9[%c0_21, %c0_22] : memref<1x128xf32, #tpu.memory_space<vmem>>, vector<1x128xf32>
    %29 = vector.broadcast %28 : vector<1x128xf32> to vector<24x128xf32>
    %30 = arith.addf %27, %29 : vector<24x128xf32>
    %cst_23 = arith.constant 0.000000e+00 : f32
    %31 = vector.broadcast %cst_23 : f32 to vector<24x128xf32>
    %32 = arith.maximumf %30, %31 : vector<24x128xf32>
    %33 = arith.truncf %32 : vector<24x128xf32> to vector<24x128xbf16>
    %c0_24 = arith.constant 0 : index
    %c0_25 = arith.constant 0 : index
    %34 = vector.load %arg10[%c0_24, %c0_25] : memref<128x128xbf16, #tpu.memory_space<vmem>>, vector<128x128xbf16>
    %cst_26 = arith.constant dense<0.000000e+00> : vector<24x128xf32>
    %35 = tpu.matmul %33, %34, %cst_26 {dimension_numbers = #tpu.dot_dimension_numbers<[1], [0], [0], [1], [0, 0, 1, 1], [], []>} : vector<24x128xbf16>, vector<128x128xbf16>, vector<24x128xf32> -> vector<24x128xf32>
    %c0_27 = arith.constant 0 : index
    %c0_28 = arith.constant 0 : index
    %36 = vector.load %arg11[%c0_27, %c0_28] : memref<1x128xf32, #tpu.memory_space<vmem>>, vector<1x128xf32>
    %37 = vector.broadcast %36 : vector<1x128xf32> to vector<24x128xf32>
    %38 = arith.addf %35, %37 : vector<24x128xf32>
    %39 = arith.truncf %38 : vector<24x128xf32> to vector<24x128xbf16>
    %c0_29 = arith.constant 0 : index
    %c0_30 = arith.constant 0 : index
    %40 = vector.load %arg12[%c0_29, %c0_30] : memref<24x128xbf16, #tpu.memory_space<vmem>>, vector<24x128xbf16>
    tpu.vector_store %arg12[%c0_29, %c0_30], %39 {strides = array<i32>} : memref<24x128xbf16, #tpu.memory_space<vmem>>, vector<24x128xbf16>,
    return
  }
  func.func @transform_0(%arg0: i32) -> (i32, i32) {
    %c0_i32 = arith.constant 0 : i32
    %c0_i32_0 = arith.constant 0 : i32
    return %arg0, %c0_i32 : i32, i32
  }
  func.func @transform_1(%arg0: i32) -> (i32, i32) {
    %c0_i32 = arith.constant 0 : i32
    %c0_i32_0 = arith.constant 0 : i32
    %c0_i32_1 = arith.constant 0 : i32
    return %c0_i32, %c0_i32_0 : i32, i32
  }
  func.func @transform_2(%arg0: i32) -> (i32, i32) {
    %c0_i32 = arith.constant 0 : i32
    %c0_i32_0 = arith.constant 0 : i32
    %c0_i32_1 = arith.constant 0 : i32
    return %c0_i32, %c0_i32_0 : i32, i32
  }
  func.func @transform_3(%arg0: i32) -> (i32, i32) {
    %c0_i32 = arith.constant 0 : i32
    %c0_i32_0 = arith.constant 0 : i32
    %c0_i32_1 = arith.constant 0 : i32
    return %c0_i32, %c0_i32_0 : i32, i32
  }
  func.func @transform_4(%arg0: i32) -> (i32, i32) {
    %c0_i32 = arith.constant 0 : i32
    %c0_i32_0 = arith.constant 0 : i32
    %c0_i32_1 = arith.constant 0 : i32
    return %c0_i32, %c0_i32_0 : i32, i32
  }
  func.func @transform_5(%arg0: i32) -> (i32, i32) {
    %c0_i32 = arith.constant 0 : i32
    %c0_i32_0 = arith.constant 0 : i32
    %c0_i32_1 = arith.constant 0 : i32
    return %c0_i32, %c0_i32_0 : i32, i32
  }
  func.func @transform_6(%arg0: i32) -> (i32, i32) {
    %c0_i32 = arith.constant 0 : i32
    %c0_i32_0 = arith.constant 0 : i32
    %c0_i32_1 = arith.constant 0 : i32
    return %c0_i32, %c0_i32_0 : i32, i32
  }
  func.func @transform_7(%arg0: i32) -> (i32, i32) {
    %c0_i32 = arith.constant 0 : i32
    %c0_i32_0 = arith.constant 0 : i32
    %c0_i32_1 = arith.constant 0 : i32
    return %c0_i32, %c0_i32_0 : i32, i32
  }
  func.func @transform_8(%arg0: i32) -> (i32, i32) {
    %c0_i32 = arith.constant 0 : i32
    %c0_i32_0 = arith.constant 0 : i32
    %c0_i32_1 = arith.constant 0 : i32
    return %c0_i32, %c0_i32_0 : i32, i32
  }
  func.func @transform_9(%arg0: i32) -> (i32, i32) {
    %c0_i32 = arith.constant 0 : i32
    %c0_i32_0 = arith.constant 0 : i32
    %c0_i32_1 = arith.constant 0 : i32
    return %c0_i32, %c0_i32_0 : i32, i32
  }
  func.func @transform_10(%arg0: i32) -> (i32, i32) {
    %c0_i32 = arith.constant 0 : i32
    %c0_i32_0 = arith.constant 0 : i32
    %c0_i32_1 = arith.constant 0 : i32
    return %c0_i32, %c0_i32_0 : i32, i32
  }
  func.func @transform_11(%arg0: i32) -> (i32, i32) {
    %c0_i32 = arith.constant 0 : i32
    %c0_i32_0 = arith.constant 0 : i32
    return %arg0, %c0_i32 : i32, i32
  }
}

</mosaic_0001>

<llo_original>
// kernel: tpu_custom_call.1
$region0: #{tpu_custom_call.1}
  #allocation0 [shape = 'u32[]', space=smem, size = 0x4, offset = 0x4, fixed_abs, tag = 'smem constant byte address 0x4 - core index']
  #allocation1 [shape = 'u32[144,128]{1,0:T(1,128)}', space=vmem, size = 0x12000, scoped, tag = 'internal scratch']
  %s0 = inlined_call_operand.hbm [shape: f32[48,128], index: 0, kind: input, shape index: {}]
  %s1 = inlined_call_operand.hbm [shape: bf16[128,512], index: 1, kind: input, shape index: {}]
  %s2 = inlined_call_operand.vmem [shape: f32[1,512], index: 2, kind: input, shape index: {}]
  %s3 = inlined_call_operand.hbm [shape: bf16[512,256], index: 3, kind: input, shape index: {}]
  %s4 = inlined_call_operand.vmem [shape: f32[1,256], index: 4, kind: input, shape index: {}]
  %s5 = inlined_call_operand.hbm [shape: bf16[256,128], index: 5, kind: input, shape index: {}]
  %s6 = inlined_call_operand.vmem [shape: f32[1,128], index: 6, kind: input, shape index: {}]
  %s7 = inlined_call_operand.hbm [shape: bf16[128,128], index: 7, kind: input, shape index: {}]
  %s8 = inlined_call_operand.vmem [shape: f32[1,128], index: 8, kind: input, shape index: {}]
  %s9 = inlined_call_operand.hbm [shape: bf16[128,128], index: 9, kind: input, shape index: {}]
  %s10 = inlined_call_operand.vmem [shape: f32[1,128], index: 10, kind: input, shape index: {}]
  %s11 = inlined_call_operand.hbm [shape: bf16[48,128], index: 11, kind: output, shape index: {}]
  %s12 = sld [smem:[#allocation0]]
  $region101: #{tpu_custom_call.1} parent=0
    _
  %s14 = ssub.s32 1, %s12
  %s15 = scalar_select 0, %s14, %s12
  $region1: #{tpu_custom_call.1} parent=0
    #allocation2 [shape = 'u8[24576]{0}', space=vmem, size = 0x6000, scoped, tag = 'input window, operand 0']
    #allocation3 [shape = 's32[2]{0}', space=sflag, size = 0x8, scoped, tag = 'scoped memory for tpu_custom_call.1']
    #allocation4 [shape = 's32[2]{0}', space=sflag, size = 0x8, scoped, tag = 'scoped memory for tpu_custom_call.1']
    #allocation5 [shape = 'u8[131072]{0}', space=vmem, size = 0x20000, scoped, tag = 'input window, operand 1, single buffered']
    #allocation6 [shape = 's32[1]{0}', space=sflag, size = 0x4, scoped, tag = 'scoped memory for tpu_custom_call.1']
    #allocation7 [shape = 'u8[262144]{0}', space=vmem, size = 0x40000, scoped, tag = 'input window, operand 3, single buffered']
    #allocation8 [shape = 'u8[65536]{0}', space=vmem, size = 0x10000, scoped, tag = 'input window, operand 5, single buffered']
    #allocation9 [shape = 's32[1]{0}', space=sflag, size = 0x4, scoped, tag = 'scoped memory for tpu_custom_call.1']
    #allocation10 [shape = 'u8[32768]{0}', space=vmem, size = 0x8000, scoped, tag = 'input window, operand 7, single buffered']
    #allocation11 [shape = 'u8[32768]{0}', space=vmem, size = 0x8000, scoped, tag = 'input window, operand 9, single buffered']
    #allocation12 [shape = 's32[1]{0}', space=sflag, size = 0x4, scoped, tag = 'scoped memory for tpu_custom_call.1']
    #allocation13 [shape = 'u8[12288]{0}', space=vmem, size = 0x3000, scoped, tag = 'output window, operand 0']
    %16 = vsyncpa [#allocation3], 0
    %s17 = scalar_lea.sflag [#allocation3], 1
    %18 = vsyncpa %s17, 0
    %19 = vsyncpa [#allocation6], 0
    %20 = vsyncpa [#allocation9], 0
    %21 = vsyncpa [#allocation12], 0
    %22 = vsyncpa [#allocation4], 0
    %s23 = scalar_lea.sflag [#allocation4], 1
    %24 = vsyncpa %s23, 0
    loop: start=0, step=1, limit=4
    $region2: #{tpu_custom_call.1} parent=1 // loop_pre_header
      _
    $region3: #{tpu_custom_call.1} parent=1 // loop_header
      %s26 = sphi 0, %s30
      %p27 = scmp.ge.s32.totalorder %s26, 4
      %s36 = sphi 0, %s38
      %s39 = sphi 0, %s36
      %s40 = sphi 0, %s39
      %s56 = sphi 0, %s40
      %s60 = sphi 0, %s60
      %s62 = sphi 0, %s60
      %s63 = sphi 0, %s62
      %s77 = sphi 0, %s63
      %s81 = sphi 0, %s81
      %s83 = sphi 0, %s81
      %s84 = sphi 0, %s83
      %s98 = sphi 0, %s84
      %s102 = sphi 0, %s102
      %s104 = sphi 0, %s102
      %s105 = sphi 0, %s104
      %s119 = sphi 0, %s105
      %s123 = sphi 0, %s123
      %s125 = sphi 0, %s123
      %s126 = sphi 0, %s125
      %s140 = sphi 0, %s126
      %s144 = sphi 0, %s144
      %s146 = sphi 0, %s144
      %s147 = sphi 0, %s146
      %s161 = sphi 0, %s147
      %s165 = sphi 0, %s165
      %s167 = sphi 0, %s165
      %s168 = sphi 0, %s167
      %s182 = sphi 0, %s168
      %s186 = sphi 0, %s186
      %s188 = sphi 0, %s186
      %s189 = sphi 0, %s188
      %s203 = sphi 0, %s189
      %s207 = sphi 0, %s207
      %s209 = sphi 0, %s207
      %s210 = sphi 0, %s209
      %s224 = sphi 0, %s210
      %s228 = sphi 0, %s228
      %s230 = sphi 0, %s228
      %s231 = sphi 0, %s230
      %s245 = sphi 0, %s231
      %s249 = sphi 0, %s249
      %s251 = sphi 0, %s249
      %s252 = sphi 0, %s251
      %s266 = sphi 0, %s252
      %s272 = sphi 0, %s274
      %s275 = sphi 0, %s272
      %s276 = sphi 0, %s275
      %s292 = sphi 0, %s276
    $region4: #{tpu_custom_call.1} parent=1 // loop_header_branch
      %29 = sbr.rel (%p27) target = $region8
    $region5: #{tpu_custom_call.1} parent=1 // loop_body
      %s31 = ssub.s32 %s26, 1
      %s32 = ssub.s32 %s26, 2
      %s33 = sadd.s32 %s26, 1
      %s34 = ssub.s32 %s26, %s33
      %p35 = scmp.eq.s32.totalorder %s34, 0
      %s37 = sadd.s32 %s36, 1
      %s38 = scalar_select %p35, %s36, %s37
      %p41 = pneg %p35
      %p42 = scmp.eq.s32.totalorder %s26, 1
      %p43 = por %p41, %p42
      %p44 = scmp.ne.s32.totalorder %s36, %s39
      %p45 = scmp.eq.s32.totalorder %s26, 0
      %p46 = por %p44, %p45
      %p47 = scmp.ne.s32.totalorder %s36, %s39
      %p48 = scmp.eq.s32.totalorder %s31, 1
      %p49 = por %p47, %p48
      %p50 = scmp.ne.s32.totalorder %s39, %s40
      %p51 = scmp.eq.s32.totalorder %s31, 0
      %p52 = por %p50, %p51
      %p53 = scmp.ne.s32.totalorder %s39, %s40
      %p54 = scmp.eq.s32.totalorder %s32, 1
      %p55 = por %p53, %p54
      %p57 = scmp.ne.s32.totalorder %s40, %s56
      %p58 = scmp.eq.s32.totalorder %s32, 0
      %p59 = por %p57, %p58
      %s61 = sadd.s32 %s60, 1
      %p64 = scmp.eq.s32.totalorder %s26, 1
      %p65 = scmp.ne.s32.totalorder %s60, %s62
      %p66 = scmp.eq.s32.totalorder %s26, 0
      %p67 = por %p65, %p66
      %p68 = scmp.ne.s32.totalorder %s60, %s62
      %p69 = scmp.eq.s32.totalorder %s31, 1
      %p70 = por %p68, %p69
      %p71 = scmp.ne.s32.totalorder %s62, %s63
      %p72 = scmp.eq.s32.totalorder %s31, 0
      %p73 = por %p71, %p72
      %p74 = scmp.ne.s32.totalorder %s62, %s63
      %p75 = scmp.eq.s32.totalorder %s32, 1
      %p76 = por %p74, %p75
      %p78 = scmp.ne.s32.totalorder %s63, %s77
      %p79 = scmp.eq.s32.totalorder %s32, 0
      %p80 = por %p78, %p79
      %s82 = sadd.s32 %s81, 1
      %p85 = scmp.eq.s32.totalorder %s26, 1
      %p86 = scmp.ne.s32.totalorder %s81, %s83
      %p87 = scmp.eq.s32.totalorder %s26, 0
      %p88 = por %p86, %p87
      %p89 = scmp.ne.s32.totalorder %s81, %s83
      %p90 = scmp.eq.s32.totalorder %s31, 1
      %p91 = por %p89, %p90
      %p92 = scmp.ne.s32.totalorder %s83, %s84
      %p93 = scmp.eq.s32.totalorder %s31, 0
      %p94 = por %p92, %p93
      %p95 = scmp.ne.s32.totalorder %s83, %s84
      %p96 = scmp.eq.s32.totalorder %s32, 1
      %p97 = por %p95, %p96
      %p99 = scmp.ne.s32.totalorder %s84, %s98
      %p100 = scmp.eq.s32.totalorder %s32, 0
      %p101 = por %p99, %p100
      %s103 = sadd.s32 %s102, 1
      %p106 = scmp.eq.s32.totalorder %s26, 1
      %p107 = scmp.ne.s32.totalorder %s102, %s104
      %p108 = scmp.eq.s32.totalorder %s26, 0
      %p109 = por %p107, %p108
      %p110 = scmp.ne.s32.totalorder %s102, %s104
      %p111 = scmp.eq.s32.totalorder %s31, 1
      %p112 = por %p110, %p111
      %p113 = scmp.ne.s32.totalorder %s104, %s105
      %p114 = scmp.eq.s32.totalorder %s31, 0
      %p115 = por %p113, %p114
      %p116 = scmp.ne.s32.totalorder %s104, %s105
      %p117 = scmp.eq.s32.totalorder %s32, 1
      %p118 = por %p116, %p117
      %p120 = scmp.ne.s32.totalorder %s105, %s119
      %p121 = scmp.eq.s32.totalorder %s32, 0
      %p122 = por %p120, %p121
      %s124 = sadd.s32 %s123, 1
      %p127 = scmp.eq.s32.totalorder %s26, 1
      %p128 = scmp.ne.s32.totalorder %s123, %s125
      %p129 = scmp.eq.s32.totalorder %s26, 0
      %p130 = por %p128, %p129
      %p131 = scmp.ne.s32.totalorder %s123, %s125
      %p132 = scmp.eq.s32.totalorder %s31, 1
      %p133 = por %p131, %p132
      %p134 = scmp.ne.s32.totalorder %s125, %s126
      %p135 = scmp.eq.s32.totalorder %s31, 0
      %p136 = por %p134, %p135
      %p137 = scmp.ne.s32.totalorder %s125, %s126
      %p138 = scmp.eq.s32.totalorder %s32, 1
      %p139 = por %p137, %p138
      %p141 = scmp.ne.s32.totalorder %s126, %s140
      %p142 = scmp.eq.s32.totalorder %s32, 0
      %p143 = por %p141, %p142
      %s145 = sadd.s32 %s144, 1
      %p148 = scmp.eq.s32.totalorder %s26, 1
      %p149 = scmp.ne.s32.totalorder %s144, %s146
      %p150 = scmp.eq.s32.totalorder %s26, 0
      %p151 = por %p149, %p150
      %p152 = scmp.ne.s32.totalorder %s144, %s146
      %p153 = scmp.eq.s32.totalorder %s31, 1
      %p154 = por %p152, %p153
      %p155 = scmp.ne.s32.totalorder %s146, %s147
      %p156 = scmp.eq.s32.totalorder %s31, 0
      %p157 = por %p155, %p156
      %p158 = scmp.ne.s32.totalorder %s146, %s147
      %p159 = scmp.eq.s32.totalorder %s32, 1
      %p160 = por %p158, %p159
      %p162 = scmp.ne.s32.totalorder %s147, %s161
      %p163 = scmp.eq.s32.totalorder %s32, 0
      %p164 = por %p162, %p163
      %s166 = sadd.s32 %s165, 1
      %p169 = scmp.eq.s32.totalorder %s26, 1
      %p170 = scmp.ne.s32.totalorder %s165, %s167
      %p171 = scmp.eq.s32.totalorder %s26, 0
      %p172 = por %p170, %p171
      %p173 = scmp.ne.s32.totalorder %s165, %s167
      %p174 = scmp.eq.s32.totalorder %s31, 1
      %p175 = por %p173, %p174
      %p176 = scmp.ne.s32.totalorder %s167, %s168
      %p177 = scmp.eq.s32.totalorder %s31, 0
      %p178 = por %p176, %p177
      %p179 = scmp.ne.s32.totalorder %s167, %s168
      %p180 = scmp.eq.s32.totalorder %s32, 1
      %p181 = por %p179, %p180
      %p183 = scmp.ne.s32.totalorder %s168, %s182
      %p184 = scmp.eq.s32.totalorder %s32, 0
      %p185 = por %p183, %p184
      %s187 = sadd.s32 %s186, 1
      %p190 = scmp.eq.s32.totalorder %s26, 1
      %p191 = scmp.ne.s32.totalorder %s186, %s188
      %p192 = scmp.eq.s32.totalorder %s26, 0
      %p193 = por %p191, %p192
      %p194 = scmp.ne.s32.totalorder %s186, %s188
      %p195 = scmp.eq.s32.totalorder %s31, 1
      %p196 = por %p194, %p195
      %p197 = scmp.ne.s32.totalorder %s188, %s189
      %p198 = scmp.eq.s32.totalorder %s31, 0
      %p199 = por %p197, %p198
      %p200 = scmp.ne.s32.totalorder %s188, %s189
      %p201 = scmp.eq.s32.totalorder %s32, 1
      %p202 = por %p200, %p201
      %p204 = scmp.ne.s32.totalorder %s189, %s203
      %p205 = scmp.eq.s32.totalorder %s32, 0
      %p206 = por %p204, %p205
      %s208 = sadd.s32 %s207, 1
      %p211 = scmp.eq.s32.totalorder %s26, 1
      %p212 = scmp.ne.s32.totalorder %s207, %s209
      %p213 = scmp.eq.s32.totalorder %s26, 0
      %p214 = por %p212, %p213
      %p215 = scmp.ne.s32.totalorder %s207, %s209
      %p216 = scmp.eq.s32.totalorder %s31, 1
      %p217 = por %p215, %p216
      %p218 = scmp.ne.s32.totalorder %s209, %s210
      %p219 = scmp.eq.s32.totalorder %s31, 0
      %p220 = por %p218, %p219
      %p221 = scmp.ne.s32.totalorder %s209, %s210
      %p222 = scmp.eq.s32.totalorder %s32, 1
      %p223 = por %p221, %p222
      %p225 = scmp.ne.s32.totalorder %s210, %s224
      %p226 = scmp.eq.s32.totalorder %s32, 0
      %p227 = por %p225, %p226
      %s229 = sadd.s32 %s228, 1
      %p232 = scmp.eq.s32.totalorder %s26, 1
      %p233 = scmp.ne.s32.totalorder %s228, %s230
      %p234 = scmp.eq.s32.totalorder %s26, 0
      %p235 = por %p233, %p234
      %p236 = scmp.ne.s32.totalorder %s228, %s230
      %p237 = scmp.eq.s32.totalorder %s31, 1
      %p238 = por %p236, %p237
      %p239 = scmp.ne.s32.totalorder %s230, %s231
      %p240 = scmp.eq.s32.totalorder %s31, 0
      %p241 = por %p239, %p240
      %p242 = scmp.ne.s32.totalorder %s230, %s231
      %p243 = scmp.eq.s32.totalorder %s32, 1
      %p244 = por %p242, %p243
      %p246 = scmp.ne.s32.totalorder %s231, %s245
      %p247 = scmp.eq.s32.totalorder %s32, 0
      %p248 = por %p246, %p247
      %s250 = sadd.s32 %s249, 1
      %p253 = scmp.eq.s32.totalorder %s26, 1
      %p254 = scmp.ne.s32.totalorder %s249, %s251
      %p255 = scmp.eq.s32.totalorder %s26, 0
      %p256 = por %p254, %p255
      %p257 = scmp.ne.s32.totalorder %s249, %s251
      %p258 = scmp.eq.s32.totalorder %s31, 1
      %p259 = por %p257, %p258
      %p260 = scmp.ne.s32.totalorder %s251, %s252
      %p261 = scmp.eq.s32.totalorder %s31, 0
      %p262 = por %p260, %p261
      %p263 = scmp.ne.s32.totalorder %s251, %s252
      %p264 = scmp.eq.s32.totalorder %s32, 1
      %p265 = por %p263, %p264
      %p267 = scmp.ne.s32.totalorder %s252, %s266
      %p268 = scmp.eq.s32.totalorder %s32, 0
      %p269 = por %p267, %p268
      %s270 = ssub.s32 %s26, %s33
      %p271 = scmp.eq.s32.totalorder %s270, 0
      %s273 = sadd.s32 %s272, 1
      %s274 = scalar_select %p271, %s272, %s273
      %p277 = pneg %p271
      %p278 = scmp.eq.s32.totalorder %s26, 1
      %p279 = por %p277, %p278
      %p280 = scmp.ne.s32.totalorder %s272, %s275
      %p281 = scmp.eq.s32.totalorder %s26, 0
      %p282 = por %p280, %p281
      %p283 = scmp.ne.s32.totalorder %s272, %s275
      %p284 = scmp.eq.s32.totalorder %s31, 1
      %p285 = por %p283, %p284
      %p286 = scmp.ne.s32.totalorder %s275, %s276
      %p287 = scmp.eq.s32.totalorder %s31, 0
      %p288 = por %p286, %p287
      %p289 = scmp.ne.s32.totalorder %s275, %s276
      %p290 = scmp.eq.s32.totalorder %s32, 1
      %p291 = por %p289, %p290
      %p293 = scmp.ne.s32.totalorder %s276, %s292
      %p294 = scmp.eq.s32.totalorder %s32, 0
      %p295 = por %p293, %p294
      %p296 = scmp.le.s32.totalorder 1, %s26
      %p297 = scmp.lt.s32.totalorder %s26, 3
      %p298 = pnand %p296, %p297
      %p299 = pneg %p298
      // Predicated region
      $region9: #{tpu_custom_call.1} parent=5 // pred_check
        _
      $region10: #{tpu_custom_call.1} parent=5 // pred_check_branch
        %301 = sbr.rel (%p298) target = $region12
      $region11: #{tpu_custom_call.1} parent=5 // pred_region
        %s302 = ssub.s32 %s26, 1
        // Predicated region
        $region13: #{tpu_custom_call.1} parent=11 // pred_check
          %p303 = pneg %p73
        $region14: #{tpu_custom_call.1} parent=11 // pred_check_branch
          %305 = sbr.rel (%p303) target = $region16
        $region15: #{tpu_custom_call.1} parent=11 // pred_region
          %s307 = ssub.s32 4096, 4096
          %308 = vsyncadd [#allocation6], %s307
          %s309 = sshll.u32 [#allocation5], 4
          %s310 = int_to_ptr.vmem [resolvable:$true] %s309
          %315 = dma.hbm_to_vmem [thread:$0]  %s1, 4096, %s310, [#allocation6], 256, 256, 16
        $region16: #{tpu_custom_call.1} parent=11 // pred_fallthru
          _
        // Predicated region
        $region17: #{tpu_custom_call.1} parent=11 // pred_check
          %p316 = pneg %p94
        $region18: #{tpu_custom_call.1} parent=11 // pred_check_branch
          %318 = sbr.rel (%p316) target = $region20
        $region19: #{tpu_custom_call.1} parent=11 // pred_region
          _
        $region20: #{tpu_custom_call.1} parent=11 // pred_fallthru
          _
        // Predicated region
        $region21: #{tpu_custom_call.1} parent=11 // pred_check
          %p319 = pneg %p115
        $region22: #{tpu_custom_call.1} parent=11 // pred_check_branch
          %321 = sbr.rel (%p319) target = $region24
        $region23: #{tpu_custom_call.1} parent=11 // pred_region
          %s323 = ssub.s32 8192, 8192
          %324 = vsyncadd [#allocation6], %s323
          %s325 = sshll.u32 [#allocation7], 4
          %s326 = int_to_ptr.vmem [resolvable:$true] %s325
          %331 = dma.hbm_to_vmem [thread:$0]  %s3, 8192, %s326, [#allocation6], 128, 128, 8
        $region24: #{tpu_custom_call.1} parent=11 // pred_fallthru
          _
        // Predicated region
        $region25: #{tpu_custom_call.1} parent=11 // pred_check
          %p332 = pneg %p136
        $region26: #{tpu_custom_call.1} parent=11 // pred_check_branch
          %334 = sbr.rel (%p332) target = $region28
        $region27: #{tpu_custom_call.1} parent=11 // pred_region
          _
        $region28: #{tpu_custom_call.1} parent=11 // pred_fallthru
          _
        // Predicated region
        $region29: #{tpu_custom_call.1} parent=11 // pred_check
          %p335 = pneg %p157
        $region30: #{tpu_custom_call.1} parent=11 // pred_check_branch
          %337 = sbr.rel (%p335) target = $region32
        $region31: #{tpu_custom_call.1} parent=11 // pred_region
          %s339 = ssub.s32 2048, 2048
          %340 = vsyncadd [#allocation9], %s339
          %s341 = sshll.u32 [#allocation8], 4
          %s342 = int_to_ptr.vmem [resolvable:$true] %s341
          %347 = dma.hbm_to_vmem [thread:$0]  %s5, 2048, %s342, [#allocation9], 64, 64, 4
        $region32: #{tpu_custom_call.1} parent=11 // pred_fallthru
          _
        // Predicated region
        $region33: #{tpu_custom_call.1} parent=11 // pred_check
          %p348 = pneg %p178
        $region34: #{tpu_custom_call.1} parent=11 // pred_check_branch
          %350 = sbr.rel (%p348) target = $region36
        $region35: #{tpu_custom_call.1} parent=11 // pred_region
          _
        $region36: #{tpu_custom_call.1} parent=11 // pred_fallthru
          _
        // Predicated region
        $region37: #{tpu_custom_call.1} parent=11 // pred_check
          %p351 = pneg %p199
        $region38: #{tpu_custom_call.1} parent=11 // pred_check_branch
          %353 = sbr.rel (%p351) target = $region40
        $region39: #{tpu_custom_call.1} parent=11 // pred_region
          %s355 = ssub.s32 1024, 1024
          %356 = vsyncadd [#allocation9], %s355
          %s357 = sshll.u32 [#allocation10], 4
          %s358 = int_to_ptr.vmem [resolvable:$true] %s357
          %363 = dma.hbm_to_vmem [thread:$0]  %s7, 1024, %s358, [#allocation9], 64, 64, 4
        $region40: #{tpu_custom_call.1} parent=11 // pred_fallthru
          _
        // Predicated region
        $region41: #{tpu_custom_call.1} parent=11 // pred_check
          %p364 = pneg %p220
        $region42: #{tpu_custom_call.1} parent=11 // pred_check_branch
          %366 = sbr.rel (%p364) target = $region44
        $region43: #{tpu_custom_call.1} parent=11 // pred_region
          _
        $region44: #{tpu_custom_call.1} parent=11 // pred_fallthru
          _
        // Predicated region
        $region45: #{tpu_custom_call.1} parent=11 // pred_check
          %p367 = pneg %p241
        $region46: #{tpu_custom_call.1} parent=11 // pred_check_branch
          %369 = sbr.rel (%p367) target = $region48
        $region47: #{tpu_custom_call.1} parent=11 // pred_region
          %s371 = ssub.s32 1024, 1024
          %372 = vsyncadd [#allocation12], %s371
          %s373 = sshll.u32 [#allocation11], 4
          %s374 = int_to_ptr.vmem [resolvable:$true] %s373
          %379 = dma.hbm_to_vmem [thread:$0]  %s9, 1024, %s374, [#allocation12], 64, 64, 4
        $region48: #{tpu_custom_call.1} parent=11 // pred_fallthru
          _
        // Predicated region
        $region49: #{tpu_custom_call.1} parent=11 // pred_check
          %p380 = pneg %p262
        $region50: #{tpu_custom_call.1} parent=11 // pred_check_branch
          %382 = sbr.rel (%p380) target = $region52
        $region51: #{tpu_custom_call.1} parent=11 // pred_region
          _
        $region52: #{tpu_custom_call.1} parent=11 // pred_fallthru
          _
      $region12: #{tpu_custom_call.1} parent=5 // pred_fallthru
        _
      %p383 = scmp.lt.s32.totalorder %s26, 2
      // Predicated region
      $region53: #{tpu_custom_call.1} parent=5 // pred_check
        %p384 = pneg %p383
      $region54: #{tpu_custom_call.1} parent=5 // pred_check_branch
        %386 = sbr.rel (%p384) target = $region56
      $region55: #{tpu_custom_call.1} parent=5 // pred_region
        // Predicated region
        $region57: #{tpu_custom_call.1} parent=55 // pred_check
          %p387 = pneg %p46
        $region58: #{tpu_custom_call.1} parent=55 // pred_check_branch
          %389 = sbr.rel (%p387) target = $region60
        $region59: #{tpu_custom_call.1} parent=55 // pred_region
          %s390 = sand.u32 %s36, 1
          %s391 = scalar_lea.sflag [#allocation3], %s390
          %s392 = sand.u32 %s36, 1
          %s393 = smul.addr %s392, 24
          %s394 = scalar_lea.vmem [#allocation2], %s393
          %s395 = smul.u32 3, %s26
          %s397 = ssub.s32 384, 384
          %398 = vsyncadd %s391, %s397
          %s399 = smul.addr %s395, 128
          %s400 = scalar_lea.hbm %s0, %s399
          %s401 = sshll.u32 %s394, 4
          %s402 = int_to_ptr.vmem [resolvable:$true] %s401
          %407 = dma.hbm_to_vmem [thread:$0]  %s400, 384, %s402, %s391, 128, 128, 8
        $region60: #{tpu_custom_call.1} parent=55 // pred_fallthru
          _
      $region56: #{tpu_custom_call.1} parent=5 // pred_fallthru
        _
      %p408 = scmp.le.s32.totalorder 1, %s26
      %p409 = scmp.lt.s32.totalorder %s26, 3
      %p410 = pnand %p408, %p409
      %p411 = pneg %p410
      // Predicated region
      $region61: #{tpu_custom_call.1} parent=5 // pred_check
        _
      $region62: #{tpu_custom_call.1} parent=5 // pred_check_branch
        %413 = sbr.rel (%p410) target = $region64
      $region63: #{tpu_custom_call.1} parent=5 // pred_region
        %s414 = ssub.s32 %s26, 1
        %s415 = sand.u32 %s39, 1
        %s416 = scalar_lea.sflag [#allocation3], %s415
        %s417 = sand.u32 %s39, 1
        %s418 = smul.addr %s417, 24
        %s419 = scalar_lea.vmem [#allocation2], %s418
        // Predicated region
        $region65: #{tpu_custom_call.1} parent=63 // pred_check
          %p420 = pneg %p52
        $region66: #{tpu_custom_call.1} parent=63 // pred_check_branch
          %422 = sbr.rel (%p420) target = $region68
        $region67: #{tpu_custom_call.1} parent=63 // pred_region
          %423 = dma.done %s416, 384
        $region68: #{tpu_custom_call.1} parent=63 // pred_fallthru
          _
        // Predicated region
        $region69: #{tpu_custom_call.1} parent=63 // pred_check
          %p424 = pneg %p73
        $region70: #{tpu_custom_call.1} parent=63 // pred_check_branch
          %426 = sbr.rel (%p424) target = $region72
        $region71: #{tpu_custom_call.1} parent=63 // pred_region
          %427 = dma.done [#allocation6], 4096
        $region72: #{tpu_custom_call.1} parent=63 // pred_fallthru
          _
        // Predicated region
        $region73: #{tpu_custom_call.1} parent=63 // pred_check
          %p428 = pneg %p115
        $region74: #{tpu_custom_call.1} parent=63 // pred_check_branch
          %430 = sbr.rel (%p428) target = $region76
        $region75: #{tpu_custom_call.1} parent=63 // pred_region
          %431 = dma.done [#allocation6], 8192
        $region76: #{tpu_custom_call.1} parent=63 // pred_fallthru
          _
        // Predicated region
        $region77: #{tpu_custom_call.1} parent=63 // pred_check
          %p432 = pneg %p157
        $region78: #{tpu_custom_call.1} parent=63 // pred_check_branch
          %434 = sbr.rel (%p432) target = $region80
        $region79: #{tpu_custom_call.1} parent=63 // pred_region
          %435 = dma.done [#allocation9], 2048
        $region80: #{tpu_custom_call.1} parent=63 // pred_fallthru
          _
        // Predicated region
        $region81: #{tpu_custom_call.1} parent=63 // pred_check
          %p436 = pneg %p199
        $region82: #{tpu_custom_call.1} parent=63 // pred_check_branch
          %438 = sbr.rel (%p436) target = $region84
        $region83: #{tpu_custom_call.1} parent=63 // pred_region
          %439 = dma.done [#allocation9], 1024
        $region84: #{tpu_custom_call.1} parent=63 // pred_fallthru
          _
        // Predicated region
        $region85: #{tpu_custom_call.1} parent=63 // pred_check
          %p440 = pneg %p241
        $region86: #{tpu_custom_call.1} parent=63 // pred_check_branch
          %442 = sbr.rel (%p440) target = $region88
        $region87: #{tpu_custom_call.1} parent=63 // pred_region
          %443 = dma.done [#allocation12], 1024
        $region88: #{tpu_custom_call.1} parent=63 // pred_fallthru
          _
        %s444 = sand.u32 %s39, 1
        %s445 = scalar_lea.sflag [#allocation3], %s444
        %s446 = sand.u32 %s39, 1
        %s447 = smul.addr %s446, 24
        %s448 = scalar_lea.vmem [#allocation2], %s447
        %p449 = pneg %p52
        %p450 = pneg %p49
        %p451 = pneg %p73
        %p452 = pneg %p70
        %p453 = pneg %p94
        %p454 = pneg %p91
        %p455 = pneg %p115
        %p456 = pneg %p112
        %p457 = pneg %p136
        %p458 = pneg %p133
        %p459 = pneg %p157
        %p460 = pneg %p154
        %p461 = pneg %p178
        %p462 = pneg %p175
        %p463 = pneg %p199
        %p464 = pneg %p196
        %p465 = pneg %p220
        %p466 = pneg %p217
        %p467 = pneg %p241
        %p468 = pneg %p238
        %p469 = pneg %p262
        %p470 = pneg %p259
        %p471 = pneg %p288
        %p472 = pneg %p285
        %s473 = sand.u32 %s275, 1
        %s474 = scalar_lea.sflag [#allocation4], %s473
        %s475 = sand.u32 %s275, 1
        %s476 = smul.addr %s475, 12
        %s477 = scalar_lea.vmem [#allocation13], %s476
        %s478 = smul.u32 3, %s31
        %s479 = smul.u32 3, %s31
        %v481 = vld [vmem:[%s419] sm:$0xff]
        %v482 = vld [vmem:[%s419 + $0x8] sm:$0xff]
        %v483 = vld [vmem:[%s419 + $0x10] sm:$0xff]
        %v484 = vpack.c.bf16 %v482, %v481
        %v485 = vpack.c.bf16 %v483, %v483
        %v486 = vld [vmem:[#allocation5] sm:$0xff]
        %v487 = vld [vmem:[#allocation5 + $0x8] sm:$0xff]
        %v488 = vld [vmem:[#allocation5 + $0x10] sm:$0xff]
        %v489 = vld [vmem:[#allocation5 + $0x18] sm:$0xff]
        %v490 = vld [vmem:[#allocation5 + $0x20] sm:$0xff]
        %v491 = vld [vmem:[#allocation5 + $0x28] sm:$0xff]
        %v492 = vld [vmem:[#allocation5 + $0x30] sm:$0xff]
        %v493 = vld [vmem:[#allocation5 + $0x38] sm:$0xff]
        %v494 = vld [vmem:[#allocation5 + $0x40] sm:$0xff]
        %v495 = vld [vmem:[#allocation5 + $0x48] sm:$0xff]
        %v496 = vld [vmem:[#allocation5 + $0x50] sm:$0xff]
        %v497 = vld [vmem:[#allocation5 + $0x58] sm:$0xff]
        %v498 = vld [vmem:[#allocation5 + $0x60] sm:$0xff]
        %v499 = vld [vmem:[#allocation5 + $0x68] sm:$0xff]
        %v500 = vld [vmem:[#allocation5 + $0x70] sm:$0xff]
        %v501 = vld [vmem:[#allocation5 + $0x78] sm:$0xff]
        %v502 = vld [vmem:[#allocation5 + $0x80] sm:$0xff]
        %v503 = vld [vmem:[#allocation5 + $0x88] sm:$0xff]
        %v504 = vld [vmem:[#allocation5 + $0x90] sm:$0xff]
        %v505 = vld [vmem:[#allocation5 + $0x98] sm:$0xff]
        %v506 = vld [vmem:[#allocation5 + $0xa0] sm:$0xff]
        %v507 = vld [vmem:[#allocation5 + $0xa8] sm:$0xff]
        %v508 = vld [vmem:[#allocation5 + $0xb0] sm:$0xff]
        %v509 = vld [vmem:[#allocation5 + $0xb8] sm:$0xff]
        %v510 = vld [vmem:[#allocation5 + $0xc0] sm:$0xff]
        %v511 = vld [vmem:[#allocation5 + $0xc8] sm:$0xff]
        %v512 = vld [vmem:[#allocation5 + $0xd0] sm:$0xff]
        %v513 = vld [vmem:[#allocation5 + $0xd8] sm:$0xff]
        %v514 = vld [vmem:[#allocation5 + $0xe0] sm:$0xff]
        %v515 = vld [vmem:[#allocation5 + $0xe8] sm:$0xff]
        %v516 = vld [vmem:[#allocation5 + $0xf0] sm:$0xff]
        %v517 = vld [vmem:[#allocation5 + $0xf8] sm:$0xff]
        %v518 = vld [vmem:[%s2] sm:$0xf]
        %v520 = vlaneseq
        %v521 = vshrl.u32 %v520, 7
        %v522 = vsub.s32 0, %v521
        %v523 = vrot.slane %v518, %v522
        %v524 = vlaneseq
        %v525 = vshrl.u32 %v524, 7
        %v526 = vsub.s32 1, %v525
        %v527 = vrot.slane %v518, %v526
        %v528 = vlaneseq
        %v529 = vshrl.u32 %v528, 7
        %v530 = vsub.s32 2, %v529
        %v531 = vrot.slane %v518, %v530
        %v532 = vlaneseq
        %v533 = vshrl.u32 %v532, 7
        %v534 = vsub.s32 3, %v533
        %v535 = vrot.slane %v518, %v534
        %v572 = vunpack.c.l.b16 %v486
        %v573 = vunpack.c.h.b16 %v486
        %v574 = vunpack.c.l.b16 %v487
        %v575 = vunpack.c.h.b16 %v487
        %v576 = vunpack.c.l.b16 %v488
        %v577 = vunpack.c.h.b16 %v488
        %v578 = vunpack.c.l.b16 %v489
        %v579 = vunpack.c.h.b16 %v489
        %v580 = vunpack.c.l.b16 %v490
        %v581 = vunpack.c.h.b16 %v490
        %v582 = vunpack.c.l.b16 %v491
        %v583 = vunpack.c.h.b16 %v491
        %v584 = vunpack.c.l.b16 %v492
        %v585 = vunpack.c.h.b16 %v492
        %v586 = vunpack.c.l.b16 %v493
        %v587 = vunpack.c.h.b16 %v493
        %v588 = vunpack.c.l.b16 %v494
        %v589 = vunpack.c.h.b16 %v494
        %v590 = vunpack.c.l.b16 %v495
        %v591 = vunpack.c.h.b16 %v495
        %v592 = vunpack.c.l.b16 %v496
        %v593 = vunpack.c.h.b16 %v496
        %v594 = vunpack.c.l.b16 %v497
        %v595 = vunpack.c.h.b16 %v497
        %v596 = vunpack.c.l.b16 %v498
        %v597 = vunpack.c.h.b16 %v498
        %v598 = vunpack.c.l.b16 %v499
        %v599 = vunpack.c.h.b16 %v499
        %v600 = vunpack.c.l.b16 %v500
        %v601 = vunpack.c.h.b16 %v500
        %v602 = vunpack.c.l.b16 %v501
        %v603 = vunpack.c.h.b16 %v501
        %v604 = vunpack.c.l.b16 %v502
        %v605 = vunpack.c.h.b16 %v502
        %v606 = vunpack.c.l.b16 %v503
        %v607 = vunpack.c.h.b16 %v503
        %v608 = vunpack.c.l.b16 %v504
        %v609 = vunpack.c.h.b16 %v504
        %v610 = vunpack.c.l.b16 %v505
        %v611 = vunpack.c.h.b16 %v505
        %v612 = vunpack.c.l.b16 %v506
        %v613 = vunpack.c.h.b16 %v506
        %v614 = vunpack.c.l.b16 %v507
        %v615 = vunpack.c.h.b16 %v507
        %v616 = vunpack.c.l.b16 %v508
        %v617 = vunpack.c.h.b16 %v508
        %v618 = vunpack.c.l.b16 %v509
        %v619 = vunpack.c.h.b16 %v509
        %v620 = vunpack.c.l.b16 %v510
        %v621 = vunpack.c.h.b16 %v510
        %v622 = vunpack.c.l.b16 %v511
        %v623 = vunpack.c.h.b16 %v511
        %v624 = vunpack.c.l.b16 %v512
        %v625 = vunpack.c.h.b16 %v512
        %v626 = vunpack.c.l.b16 %v513
        %v627 = vunpack.c.h.b16 %v513
        %v628 = vunpack.c.l.b16 %v514
        %v629 = vunpack.c.h.b16 %v514
        %v630 = vunpack.c.l.b16 %v515
        %v631 = vunpack.c.h.b16 %v515
        %v632 = vunpack.c.l.b16 %v516
        %v633 = vunpack.c.h.b16 %v516
        %v634 = vunpack.c.l.b16 %v517
        %v635 = vunpack.c.h.b16 %v517
        %v636 = vpack.c.b16 %v576, %v572
        %v637 = vpack.c.b16 %v577, %v573
        %v638 = vpack.c.b16 %v578, %v574
        %v639 = vpack.c.b16 %v579, %v575
        %v640 = vpack.c.b16 %v584, %v580
        %v641 = vpack.c.b16 %v585, %v581
        %v642 = vpack.c.b16 %v586, %v582
        %v643 = vpack.c.b16 %v587, %v583
        %v644 = vpack.c.b16 %v592, %v588
        %v645 = vpack.c.b16 %v593, %v589
        %v646 = vpack.c.b16 %v594, %v590
        %v647 = vpack.c.b16 %v595, %v591
        %v648 = vpack.c.b16 %v600, %v596
        %v649 = vpack.c.b16 %v601, %v597
        %v650 = vpack.c.b16 %v602, %v598
        %v651 = vpack.c.b16 %v603, %v599
        %v652 = vpack.c.b16 %v608, %v604
        %v653 = vpack.c.b16 %v609, %v605
        %v654 = vpack.c.b16 %v610, %v606
        %v655 = vpack.c.b16 %v611, %v607
        %v656 = vpack.c.b16 %v616, %v612
        %v657 = vpack.c.b16 %v617, %v613
        %v658 = vpack.c.b16 %v618, %v614
        %v659 = vpack.c.b16 %v619, %v615
        %v660 = vpack.c.b16 %v624, %v620
        %v661 = vpack.c.b16 %v625, %v621
        %v662 = vpack.c.b16 %v626, %v622
        %v663 = vpack.c.b16 %v627, %v623
        %v664 = vpack.c.b16 %v632, %v628
        %v665 = vpack.c.b16 %v633, %v629
        %v666 = vpack.c.b16 %v634, %v630
        %v667 = vpack.c.b16 %v635, %v631
        %700 = vmatprep.subr.bf16.mxu0 %v637
        %701 = vmatpush1.bf16.msra.mxu0 %v636
        %702 = vmatprep.subr.bf16.mxu0 %v641
        %703 = vmatpush1.bf16.msra.mxu0 %v640
        %704 = vmatprep.subr.bf16.mxu0 %v645
        %705 = vmatpush1.bf16.msra.mxu0 %v644
        %706 = vmatprep.subr.bf16.mxu0 %v649
        %707 = vmatpush1.bf16.msra.mxu0 %v648
        %708 = vmatprep.subr.bf16.mxu0 %v653
        %709 = vmatpush1.bf16.msra.mxu0 %v652
        %710 = vmatprep.subr.bf16.mxu0 %v657
        %711 = vmatpush1.bf16.msra.mxu0 %v656
        %712 = vmatprep.subr.bf16.mxu0 %v661
        %713 = vmatpush1.bf16.msra.mxu0 %v660
        %714 = vmatprep.subr.bf16.mxu0 %v665
        %715 = vmatpush1.bf16.msra.mxu0 %v664
        %716 = vmatprep.subr.bf16.mxu0 0
        %717 = vmatpush1.bf16.msra.mxu0 0
        %718 = vmatprep.subr.bf16.mxu0 0
        %719 = vmatpush1.bf16.msra.mxu0 0
        %720 = vmatprep.subr.bf16.mxu0 0
        %721 = vmatpush1.bf16.msra.mxu0 0
        %722 = vmatprep.subr.bf16.mxu0 0
        %723 = vmatpush1.bf16.msra.mxu0 0
        %724 = vmatprep.subr.bf16.mxu0 0
        %725 = vmatpush1.bf16.msra.mxu0 0
        %726 = vmatprep.subr.bf16.mxu0 0
        %727 = vmatpush1.bf16.msra.mxu0 0
        %728 = vmatprep.subr.bf16.mxu0 0
        %729 = vmatpush1.bf16.msra.mxu0 0
        %730 = vmatprep.subr.bf16.mxu0 0
        %731 = vmatpush1.bf16.msra.mxu0 0
        %732 = vmatprep.mubr.bf16.mxu0 0
        %733 = vmatmul.mubr.bf16.gmra.mrb[0].mxu0 %v484
        %v734 = vpop.f32.mrb[0].mxu0
        %v735 = vadd.f32 %v523, %v734
        %v736 = vpop.f32.mrb[0].mxu0
        %v737 = vadd.f32 %v527, %v736
        %v738 = vpop.f32.mrb[0].mxu0
        %v739 = vadd.f32 %v523, %v738
        %v740 = vpop.f32.mrb[0].mxu0
        %v741 = vadd.f32 %v527, %v740
        %742 = vmatprep.mubr.bf16.mxu0 0
        %743 = vmatmul.mubr.bf16.gmra.mrb[0].mxu0 %v485
        %v744 = vpop.f32.mrb[0].mxu0
        %v745 = vadd.f32 %v523, %v744
        %v746 = vpop.f32.mrb[0].mxu0
        %v747 = vadd.f32 %v527, %v746
        %v748 = vpop.f32.mrb[0].mxu0
        %v749 = vpop.f32.mrb[0].mxu0
        %750 = vdwg.mxu0
        %751 = vmatprep.subr.bf16.mxu0 %v639
        %752 = vmatpush1.bf16.msra.mxu0 %v638
        %753 = vmatprep.subr.bf16.mxu0 %v643
        %754 = vmatpush1.bf16.msra.mxu0 %v642
        %755 = vmatprep.subr.bf16.mxu0 %v647
        %756 = vmatpush1.bf16.msra.mxu0 %v646
        %757 = vmatprep.subr.bf16.mxu0 %v651
        %758 = vmatpush1.bf16.msra.mxu0 %v650
        %759 = vmatprep.subr.bf16.mxu0 %v655
        %760 = vmatpush1.bf16.msra.mxu0 %v654
        %761 = vmatprep.subr.bf16.mxu0 %v659
        %762 = vmatpush1.bf16.msra.mxu0 %v658
        %763 = vmatprep.subr.bf16.mxu0 %v663
        %764 = vmatpush1.bf16.msra.mxu0 %v662
        %765 = vmatprep.subr.bf16.mxu0 %v667
        %766 = vmatpush1.bf16.msra.mxu0 %v666
        %767 = vmatprep.subr.bf16.mxu0 0
        %768 = vmatpush1.bf16.msra.mxu0 0
        %769 = vmatprep.subr.bf16.mxu0 0
        %770 = vmatpush1.bf16.msra.mxu0 0
        %771 = vmatprep.subr.bf16.mxu0 0
        %772 = vmatpush1.bf16.msra.mxu0 0
        %773 = vmatprep.subr.bf16.mxu0 0
        %774 = vmatpush1.bf16.msra.mxu0 0
        %775 = vmatprep.subr.bf16.mxu0 0
        %776 = vmatpush1.bf16.msra.mxu0 0
        %777 = vmatprep.subr.bf16.mxu0 0
        %778 = vmatpush1.bf16.msra.mxu0 0
        %779 = vmatprep.subr.bf16.mxu0 0
        %780 = vmatpush1.bf16.msra.mxu0 0
        %781 = vmatprep.subr.bf16.mxu0 0
        %782 = vmatpush1.bf16.msra.mxu0 0
        %783 = vmatprep.mubr.bf16.mxu0 0
        %784 = vmatmul.mubr.bf16.gmra.mrb[0].mxu0 %v484
        %v785 = vpop.f32.mrb[0].mxu0
        %v786 = vadd.f32 %v531, %v785
        %v787 = vpop.f32.mrb[0].mxu0
        %v788 = vadd.f32 %v535, %v787
        %v789 = vpop.f32.mrb[0].mxu0
        %v790 = vadd.f32 %v531, %v789
        %v791 = vpop.f32.mrb[0].mxu0
        %v792 = vadd.f32 %v535, %v791
        %793 = vmatprep.mubr.bf16.mxu0 0
        %794 = vmatmul.mubr.bf16.gmra.mrb[0].mxu0 %v485
        %v795 = vpop.f32.mrb[0].mxu0
        %v796 = vadd.f32 %v531, %v795
        %v797 = vpop.f32.mrb[0].mxu0
        %v798 = vadd.f32 %v535, %v797
        %v799 = vpop.f32.mrb[0].mxu0
        %v800 = vpop.f32.mrb[0].mxu0
        %801 = vdwg.mxu0
        %v802 = vmax.f32 %v735, 0.0
        %v803 = vmax.f32 %v737, 0.0
        %v804 = vmax.f32 %v786, 0.0
        %v805 = vmax.f32 %v788, 0.0
        %v806 = vmax.f32 %v739, 0.0
        %v807 = vmax.f32 %v741, 0.0
        %v808 = vmax.f32 %v790, 0.0
        %v809 = vmax.f32 %v792, 0.0
        %v810 = vmax.f32 %v745, 0.0
        %v811 = vmax.f32 %v747, 0.0
        %v812 = vmax.f32 %v796, 0.0
        %v813 = vmax.f32 %v798, 0.0
        %v814 = vpack.c.bf16 %v806, %v802
        %v815 = vpack.c.bf16 %v807, %v803
        %v816 = vpack.c.bf16 %v808, %v804
        %v817 = vpack.c.bf16 %v809, %v805
        %v818 = vpack.c.bf16 %v810, %v810
        %v819 = vpack.c.bf16 %v811, %v811
        %v820 = vpack.c.bf16 %v812, %v812
        %v821 = vpack.c.bf16 %v813, %v813
        %v822 = vld [vmem:[#allocation7] sm:$0xff]
        %v823 = vld [vmem:[#allocation7 + $0x8] sm:$0xff]
        %v824 = vld [vmem:[#allocation7 + $0x10] sm:$0xff]
        %v825 = vld [vmem:[#allocation7 + $0x18] sm:$0xff]
        %v826 = vld [vmem:[#allocation7 + $0x20] sm:$0xff]
        %v827 = vld [vmem:[#allocation7 + $0x28] sm:$0xff]
        %v828 = vld [vmem:[#allocation7 + $0x30] sm:$0xff]
        %v829 = vld [vmem:[#allocation7 + $0x38] sm:$0xff]
        %v830 = vld [vmem:[#allocation7 + $0x40] sm:$0xff]
        %v831 = vld [vmem:[#allocation7 + $0x48] sm:$0xff]
        %v832 = vld [vmem:[#allocation7 + $0x50] sm:$0xff]
        %v833 = vld [vmem:[#allocation7 + $0x58] sm:$0xff]
        %v834 = vld [vmem:[#allocation7 + $0x60] sm:$0xff]
        %v835 = vld [vmem:[#allocation7 + $0x68] sm:$0xff]
        %v836 = vld [vmem:[#allocation7 + $0x70] sm:$0xff]
        %v837 = vld [vmem:[#allocation7 + $0x78] sm:$0xff]
        %v838 = vld [vmem:[#allocation7 + $0x80] sm:$0xff]
        %v839 = vld [vmem:[#allocation7 + $0x88] sm:$0xff]
        %v840 = vld [vmem:[#allocation7 + $0x90] sm:$0xff]
        %v841 = vld [vmem:[#allocation7 + $0x98] sm:$0xff]
        %v842 = vld [vmem:[#allocation7 + $0xa0] sm:$0xff]
        %v843 = vld [vmem:[#allocation7 + $0xa8] sm:$0xff]
        %v844 = vld [vmem:[#allocation7 + $0xb0] sm:$0xff]
        %v845 = vld [vmem:[#allocation7 + $0xb8] sm:$0xff]
        %v846 = vld [vmem:[#allocation7 + $0xc0] sm:$0xff]
        %v847 = vld [vmem:[#allocation7 + $0xc8] sm:$0xff]
        %v848 = vld [vmem:[#allocation7 + $0xd0] sm:$0xff]
        %v849 = vld [vmem:[#allocation7 + $0xd8] sm:$0xff]
        %v850 = vld [vmem:[#allocation7 + $0xe0] sm:$0xff]
        %v851 = vld [vmem:[#allocation7 + $0xe8] sm:$0xff]
        %v852 = vld [vmem:[#allocation7 + $0xf0] sm:$0xff]
        %v853 = vld [vmem:[#allocation7 + $0xf8] sm:$0xff]
        %v854 = vld [vmem:[#allocation7 + $0x100] sm:$0xff]
        %v855 = vld [vmem:[#allocation7 + $0x108] sm:$0xff]
        %v856 = vld [vmem:[#allocation7 + $0x110] sm:$0xff]
        %v857 = vld [vmem:[#allocation7 + $0x118] sm:$0xff]
        %v858 = vld [vmem:[#allocation7 + $0x120] sm:$0xff]
        %v859 = vld [vmem:[#allocation7 + $0x128] sm:$0xff]
        %v860 = vld [vmem:[#allocation7 + $0x130] sm:$0xff]
        %v861 = vld [vmem:[#allocation7 + $0x138] sm:$0xff]
        %v862 = vld [vmem:[#allocation7 + $0x140] sm:$0xff]
        %v863 = vld [vmem:[#allocation7 + $0x148] sm:$0xff]
        %v864 = vld [vmem:[#allocation7 + $0x150] sm:$0xff]
        %v865 = vld [vmem:[#allocation7 + $0x158] sm:$0xff]
        %v866 = vld [vmem:[#allocation7 + $0x160] sm:$0xff]
        %v867 = vld [vmem:[#allocation7 + $0x168] sm:$0xff]
        %v868 = vld [vmem:[#allocation7 + $0x170] sm:$0xff]
        %v869 = vld [vmem:[#allocation7 + $0x178] sm:$0xff]
        %v870 = vld [vmem:[#allocation7 + $0x180] sm:$0xff]
        %v871 = vld [vmem:[#allocation7 + $0x188] sm:$0xff]
        %v872 = vld [vmem:[#allocation7 + $0x190] sm:$0xff]
        %v873 = vld [vmem:[#allocation7 + $0x198] sm:$0xff]
        %v874 = vld [vmem:[#allocation7 + $0x1a0] sm:$0xff]
        %v875 = vld [vmem:[#allocation7 + $0x1a8] sm:$0xff]
        %v876 = vld [vmem:[#allocation7 + $0x1b0] sm:$0xff]
        %v877 = vld [vmem:[#allocation7 + $0x1b8] sm:$0xff]
        %v878 = vld [vmem:[#allocation7 + $0x1c0] sm:$0xff]
        %v879 = vld [vmem:[#allocation7 + $0x1c8] sm:$0xff]
        %v880 = vld [vmem:[#allocation7 + $0x1d0] sm:$0xff]
        %v881 = vld [vmem:[#allocation7 + $0x1d8] sm:$0xff]
        %v882 = vld [vmem:[#allocation7 + $0x1e0] sm:$0xff]
        %v883 = vld [vmem:[#allocation7 + $0x1e8] sm:$0xff]
        %v884 = vld [vmem:[#allocation7 + $0x1f0] sm:$0xff]
        %v885 = vld [vmem:[#allocation7 + $0x1f8] sm:$0xff]
        %v886 = vld [vmem:[%s4] sm:$0x3]
        %v888 = vlaneseq
        %v889 = vshrl.u32 %v888, 7
        %v890 = vsub.s32 0, %v889
        %v891 = vrot.slane %v886, %v890
        %v892 = vlaneseq
        %v893 = vshrl.u32 %v892, 7
        %v894 = vsub.s32 1, %v893
        %v895 = vrot.slane %v886, %v894
        %v962 = vunpack.c.l.b16 %v822
        %v963 = vunpack.c.h.b16 %v822
        %v964 = vunpack.c.l.b16 %v823
        %v965 = vunpack.c.h.b16 %v823
        %v966 = vunpack.c.l.b16 %v824
        %v967 = vunpack.c.h.b16 %v824
        %v968 = vunpack.c.l.b16 %v825
        %v969 = vunpack.c.h.b16 %v825
        %v970 = vunpack.c.l.b16 %v826
        %v971 = vunpack.c.h.b16 %v826
        %v972 = vunpack.c.l.b16 %v827
        %v973 = vunpack.c.h.b16 %v827
        %v974 = vunpack.c.l.b16 %v828
        %v975 = vunpack.c.h.b16 %v828
        %v976 = vunpack.c.l.b16 %v829
        %v977 = vunpack.c.h.b16 %v829
        %v978 = vunpack.c.l.b16 %v830
        %v979 = vunpack.c.h.b16 %v830
        %v980 = vunpack.c.l.b16 %v831
        %v981 = vunpack.c.h.b16 %v831
        %v982 = vunpack.c.l.b16 %v832
        %v983 = vunpack.c.h.b16 %v832
        %v984 = vunpack.c.l.b16 %v833
        %v985 = vunpack.c.h.b16 %v833
        %v986 = vunpack.c.l.b16 %v834
        %v987 = vunpack.c.h.b16 %v834
        %v988 = vunpack.c.l.b16 %v835
        %v989 = vunpack.c.h.b16 %v835
        %v990 = vunpack.c.l.b16 %v836
        %v991 = vunpack.c.h.b16 %v836
        %v992 = vunpack.c.l.b16 %v837
        %v993 = vunpack.c.h.b16 %v837
        %v994 = vunpack.c.l.b16 %v838
        %v995 = vunpack.c.h.b16 %v838
        %v996 = vunpack.c.l.b16 %v839
        %v997 = vunpack.c.h.b16 %v839
        %v998 = vunpack.c.l.b16 %v840
        %v999 = vunpack.c.h.b16 %v840
        %v1000 = vunpack.c.l.b16 %v841
        %v1001 = vunpack.c.h.b16 %v841
        %v1002 = vunpack.c.l.b16 %v842
        %v1003 = vunpack.c.h.b16 %v842
        %v1004 = vunpack.c.l.b16 %v843
        %v1005 = vunpack.c.h.b16 %v843
        %v1006 = vunpack.c.l.b16 %v844
        %v1007 = vunpack.c.h.b16 %v844
        %v1008 = vunpack.c.l.b16 %v845
        %v1009 = vunpack.c.h.b16 %v845
        %v1010 = vunpack.c.l.b16 %v846
        %v1011 = vunpack.c.h.b16 %v846
        %v1012 = vunpack.c.l.b16 %v847
        %v1013 = vunpack.c.h.b16 %v847
        %v1014 = vunpack.c.l.b16 %v848
        %v1015 = vunpack.c.h.b16 %v848
        %v1016 = vunpack.c.l.b16 %v849
        %v1017 = vunpack.c.h.b16 %v849
        %v1018 = vunpack.c.l.b16 %v850
        %v1019 = vunpack.c.h.b16 %v850
        %v1020 = vunpack.c.l.b16 %v851
        %v1021 = vunpack.c.h.b16 %v851
        %v1022 = vunpack.c.l.b16 %v852
        %v1023 = vunpack.c.h.b16 %v852
        %v1024 = vunpack.c.l.b16 %v853
        %v1025 = vunpack.c.h.b16 %v853
        %v1026 = vunpack.c.l.b16 %v854
        %v1027 = vunpack.c.h.b16 %v854
        %v1028 = vunpack.c.l.b16 %v855
        %v1029 = vunpack.c.h.b16 %v855
        %v1030 = vunpack.c.l.b16 %v856
        %v1031 = vunpack.c.h.b16 %v856
        %v1032 = vunpack.c.l.b16 %v857
        %v1033 = vunpack.c.h.b16 %v857
        %v1034 = vunpack.c.l.b16 %v858
        %v1035 = vunpack.c.h.b16 %v858
        %v1036 = vunpack.c.l.b16 %v859
        %v1037 = vunpack.c.h.b16 %v859
        %v1038 = vunpack.c.l.b16 %v860
        %v1039 = vunpack.c.h.b16 %v860
        %v1040 = vunpack.c.l.b16 %v861
        %v1041 = vunpack.c.h.b16 %v861
        %v1042 = vunpack.c.l.b16 %v862
        %v1043 = vunpack.c.h.b16 %v862
        %v1044 = vunpack.c.l.b16 %v863
        %v1045 = vunpack.c.h.b16 %v863
        %v1046 = vunpack.c.l.b16 %v864
        %v1047 = vunpack.c.h.b16 %v864
        %v1048 = vunpack.c.l.b16 %v865
        %v1049 = vunpack.c.h.b16 %v865
        %v1050 = vunpack.c.l.b16 %v866
        %v1051 = vunpack.c.h.b16 %v866
        %v1052 = vunpack.c.l.b16 %v867
        %v1053 = vunpack.c.h.b16 %v867
        %v1054 = vunpack.c.l.b16 %v868
        %v1055 = vunpack.c.h.b16 %v868
        %v1056 = vunpack.c.l.b16 %v869
        %v1057 = vunpack.c.h.b16 %v869
        %v1058 = vunpack.c.l.b16 %v870
        %v1059 = vunpack.c.h.b16 %v870
        %v1060 = vunpack.c.l.b16 %v871
        %v1061 = vunpack.c.h.b16 %v871
        %v1062 = vunpack.c.l.b16 %v872
        %v1063 = vunpack.c.h.b16 %v872
        %v1064 = vunpack.c.l.b16 %v873
        %v1065 = vunpack.c.h.b16 %v873
        %v1066 = vunpack.c.l.b16 %v874
        %v1067 = vunpack.c.h.b16 %v874
        %v1068 = vunpack.c.l.b16 %v875
        %v1069 = vunpack.c.h.b16 %v875
        %v1070 = vunpack.c.l.b16 %v876
        %v1071 = vunpack.c.h.b16 %v876
        %v1072 = vunpack.c.l.b16 %v877
        %v1073 = vunpack.c.h.b16 %v877
        %v1074 = vunpack.c.l.b16 %v878
        %v1075 = vunpack.c.h.b16 %v878
        %v1076 = vunpack.c.l.b16 %v879
        %v1077 = vunpack.c.h.b16 %v879
        %v1078 = vunpack.c.l.b16 %v880
        %v1079 = vunpack.c.h.b16 %v880
        %v1080 = vunpack.c.l.b16 %v881
        %v1081 = vunpack.c.h.b16 %v881
        %v1082 = vunpack.c.l.b16 %v882
        %v1083 = vunpack.c.h.b16 %v882
        %v1084 = vunpack.c.l.b16 %v883
        %v1085 = vunpack.c.h.b16 %v883
        %v1086 = vunpack.c.l.b16 %v884
        %v1087 = vunpack.c.h.b16 %v884
        %v1088 = vunpack.c.l.b16 %v885
        %v1089 = vunpack.c.h.b16 %v885
        %v1090 = vpack.c.b16 %v964, %v962
        %v1091 = vpack.c.b16 %v965, %v963
        %v1092 = vpack.c.b16 %v968, %v966
        %v1093 = vpack.c.b16 %v969, %v967
        %v1094 = vpack.c.b16 %v972, %v970
        %v1095 = vpack.c.b16 %v973, %v971
        %v1096 = vpack.c.b16 %v976, %v974
        %v1097 = vpack.c.b16 %v977, %v975
        %v1098 = vpack.c.b16 %v980, %v978
        %v1099 = vpack.c.b16 %v981, %v979
        %v1100 = vpack.c.b16 %v984, %v982
        %v1101 = vpack.c.b16 %v985, %v983
        %v1102 = vpack.c.b16 %v988, %v986
        %v1103 = vpack.c.b16 %v989, %v987
        %v1104 = vpack.c.b16 %v992, %v990
        %v1105 = vpack.c.b16 %v993, %v991
        %v1106 = vpack.c.b16 %v996, %v994
        %v1107 = vpack.c.b16 %v997, %v995
        %v1108 = vpack.c.b16 %v1000, %v998
        %v1109 = vpack.c.b16 %v1001, %v999
        %v1110 = vpack.c.b16 %v1004, %v1002
        %v1111 = vpack.c.b16 %v1005, %v1003
        %v1112 = vpack.c.b16 %v1008, %v1006
        %v1113 = vpack.c.b16 %v1009, %v1007
        %v1114 = vpack.c.b16 %v1012, %v1010
        %v1115 = vpack.c.b16 %v1013, %v1011
        %v1116 = vpack.c.b16 %v1016, %v1014
        %v1117 = vpack.c.b16 %v1017, %v1015
        %v1118 = vpack.c.b16 %v1020, %v1018
        %v1119 = vpack.c.b16 %v1021, %v1019
        %v1120 = vpack.c.b16 %v1024, %v1022
        %v1121 = vpack.c.b16 %v1025, %v1023
        %v1122 = vpack.c.b16 %v1028, %v1026
        %v1123 = vpack.c.b16 %v1029, %v1027
        %v1124 = vpack.c.b16 %v1032, %v1030
        %v1125 = vpack.c.b16 %v1033, %v1031
        %v1126 = vpack.c.b16 %v1036, %v1034
        %v1127 = vpack.c.b16 %v1037, %v1035
        %v1128 = vpack.c.b16 %v1040, %v1038
        %v1129 = vpack.c.b16 %v1041, %v1039
        %v1130 = vpack.c.b16 %v1044, %v1042
        %v1131 = vpack.c.b16 %v1045, %v1043
        %v1132 = vpack.c.b16 %v1048, %v1046
        %v1133 = vpack.c.b16 %v1049, %v1047
        %v1134 = vpack.c.b16 %v1052, %v1050
        %v1135 = vpack.c.b16 %v1053, %v1051
        %v1136 = vpack.c.b16 %v1056, %v1054
        %v1137 = vpack.c.b16 %v1057, %v1055
        %v1138 = vpack.c.b16 %v1060, %v1058
        %v1139 = vpack.c.b16 %v1061, %v1059
        %v1140 = vpack.c.b16 %v1064, %v1062
        %v1141 = vpack.c.b16 %v1065, %v1063
        %v1142 = vpack.c.b16 %v1068, %v1066
        %v1143 = vpack.c.b16 %v1069, %v1067
        %v1144 = vpack.c.b16 %v1072, %v1070
        %v1145 = vpack.c.b16 %v1073, %v1071
        %v1146 = vpack.c.b16 %v1076, %v1074
        %v1147 = vpack.c.b16 %v1077, %v1075
        %v1148 = vpack.c.b16 %v1080, %v1078
        %v1149 = vpack.c.b16 %v1081, %v1079
        %v1150 = vpack.c.b16 %v1084, %v1082
        %v1151 = vpack.c.b16 %v1085, %v1083
        %v1152 = vpack.c.b16 %v1088, %v1086
        %v1153 = vpack.c.b16 %v1089, %v1087
        %1218 = vmatprep.subr.bf16.mxu0 %v1091
        %1219 = vmatpush1.bf16.msra.mxu0 %v1090
        %1220 = vmatprep.subr.bf16.mxu0 %v1093
        %1221 = vmatpush1.bf16.msra.mxu0 %v1092
        %1222 = vmatprep.subr.bf16.mxu0 %v1095
        %1223 = vmatpush1.bf16.msra.mxu0 %v1094
        %1224 = vmatprep.subr.bf16.mxu0 %v1097
        %1225 = vmatpush1.bf16.msra.mxu0 %v1096
        %1226 = vmatprep.subr.bf16.mxu0 %v1099
        %1227 = vmatpush1.bf16.msra.mxu0 %v1098
        %1228 = vmatprep.subr.bf16.mxu0 %v1101
        %1229 = vmatpush1.bf16.msra.mxu0 %v1100
        %1230 = vmatprep.subr.bf16.mxu0 %v1103
        %1231 = vmatpush1.bf16.msra.mxu0 %v1102
        %1232 = vmatprep.subr.bf16.mxu0 %v1105
        %1233 = vmatpush1.bf16.msra.mxu0 %v1104
        %1234 = vmatprep.subr.bf16.mxu0 %v1107
        %1235 = vmatpush1.bf16.msra.mxu0 %v1106
        %1236 = vmatprep.subr.bf16.mxu0 %v1109
        %1237 = vmatpush1.bf16.msra.mxu0 %v1108
        %1238 = vmatprep.subr.bf16.mxu0 %v1111
        %1239 = vmatpush1.bf16.msra.mxu0 %v1110
        %1240 = vmatprep.subr.bf16.mxu0 %v1113
        %1241 = vmatpush1.bf16.msra.mxu0 %v1112
        %1242 = vmatprep.subr.bf16.mxu0 %v1115
        %1243 = vmatpush1.bf16.msra.mxu0 %v1114
        %1244 = vmatprep.subr.bf16.mxu0 %v1117
        %1245 = vmatpush1.bf16.msra.mxu0 %v1116
        %1246 = vmatprep.subr.bf16.mxu0 %v1119
        %1247 = vmatpush1.bf16.msra.mxu0 %v1118
        %1248 = vmatprep.subr.bf16.mxu0 %v1121
        %1249 = vmatpush1.bf16.msra.mxu0 %v1120
        %1250 = vmatprep.mubr.bf16.mxu0 %v815
        %1251 = vmatmul.mubr.bf16.gmra.mrb[0].mxu0 %v814
        %v1252 = vpop.f32.mrb[0].mxu0
        %v1253 = vadd.f32 %v891, %v1252
        %v1254 = vpop.f32.mrb[0].mxu0
        %v1255 = vadd.f32 %v895, %v1254
        %v1256 = vpop.f32.mrb[0].mxu0
        %v1257 = vadd.f32 %v891, %v1256
        %v1258 = vpop.f32.mrb[0].mxu0
        %v1259 = vadd.f32 %v895, %v1258
        %1260 = vmatprep.mubr.bf16.mxu0 %v819
        %1261 = vmatmul.mubr.bf16.gmra.mrb[0].mxu0 %v818
        %v1262 = vpop.f32.mrb[0].mxu0
        %v1263 = vadd.f32 %v891, %v1262
        %v1264 = vpop.f32.mrb[0].mxu0
        %v1265 = vadd.f32 %v895, %v1264
        %v1266 = vpop.f32.mrb[0].mxu0
        %v1267 = vpop.f32.mrb[0].mxu0
        %1268 = vdwg.mxu0
        %1269 = vmatprep.subr.bf16.mxu0 %v1123
        %1270 = vmatpush1.bf16.msra.mxu0 %v1122
        %1271 = vmatprep.subr.bf16.mxu0 %v1125
        %1272 = vmatpush1.bf16.msra.mxu0 %v1124
        %1273 = vmatprep.subr.bf16.mxu0 %v1127
        %1274 = vmatpush1.bf16.msra.mxu0 %v1126
        %1275 = vmatprep.subr.bf16.mxu0 %v1129
        %1276 = vmatpush1.bf16.msra.mxu0 %v1128
        %1277 = vmatprep.subr.bf16.mxu0 %v1131
        %1278 = vmatpush1.bf16.msra.mxu0 %v1130
        %1279 = vmatprep.subr.bf16.mxu0 %v1133
        %1280 = vmatpush1.bf16.msra.mxu0 %v1132
        %1281 = vmatprep.subr.bf16.mxu0 %v1135
        %1282 = vmatpush1.bf16.msra.mxu0 %v1134
        %1283 = vmatprep.subr.bf16.mxu0 %v1137
        %1284 = vmatpush1.bf16.msra.mxu0 %v1136
        %1285 = vmatprep.subr.bf16.mxu0 %v1139
        %1286 = vmatpush1.bf16.msra.mxu0 %v1138
        %1287 = vmatprep.subr.bf16.mxu0 %v1141
        %1288 = vmatpush1.bf16.msra.mxu0 %v1140
        %1289 = vmatprep.subr.bf16.mxu0 %v1143
        %1290 = vmatpush1.bf16.msra.mxu0 %v1142
        %1291 = vmatprep.subr.bf16.mxu0 %v1145
        %1292 = vmatpush1.bf16.msra.mxu0 %v1144
        %1293 = vmatprep.subr.bf16.mxu0 %v1147
        %1294 = vmatpush1.bf16.msra.mxu0 %v1146
        %1295 = vmatprep.subr.bf16.mxu0 %v1149
        %1296 = vmatpush1.bf16.msra.mxu0 %v1148
        %1297 = vmatprep.subr.bf16.mxu0 %v1151
        %1298 = vmatpush1.bf16.msra.mxu0 %v1150
        %1299 = vmatprep.subr.bf16.mxu0 %v1153
        %1300 = vmatpush1.bf16.msra.mxu0 %v1152
        %1301 = vmatprep.mubr.bf16.mxu0 %v817
        %1302 = vmatmul.mubr.bf16.gmra.mrb[0].mxu0 %v816
        %v1303 = vpop.f32.mrb[0].mxu0
        %v1304 = vadd.f32 %v1253, %v1303
        %v1305 = vpop.f32.mrb[0].mxu0
        %v1306 = vadd.f32 %v1255, %v1305
        %v1307 = vpop.f32.mrb[0].mxu0
        %v1308 = vadd.f32 %v1257, %v1307
        %v1309 = vpop.f32.mrb[0].mxu0
        %v1310 = vadd.f32 %v1259, %v1309
        %1311 = vmatprep.mubr.bf16.mxu0 %v821
        %1312 = vmatmul.mubr.bf16.gmra.mrb[0].mxu0 %v820
        %v1313 = vpop.f32.mrb[0].mxu0
        %v1314 = vadd.f32 %v1263, %v1313
        %v1315 = vpop.f32.mrb[0].mxu0
        %v1316 = vadd.f32 %v1265, %v1315
        %v1317 = vpop.f32.mrb[0].mxu0
        %v1318 = vpop.f32.mrb[0].mxu0
        %1319 = vdwg.mxu0
        %v1320 = vmax.f32 %v1304, 0.0
        %v1321 = vmax.f32 %v1306, 0.0
        %v1322 = vmax.f32 %v1308, 0.0
        %v1323 = vmax.f32 %v1310, 0.0
        %v1324 = vmax.f32 %v1314, 0.0
        %v1325 = vmax.f32 %v1316, 0.0
        %v1326 = vpack.c.bf16 %v1322, %v1320
        %v1327 = vpack.c.bf16 %v1323, %v1321
        %v1328 = vpack.c.bf16 %v1324, %v1324
        %v1329 = vpack.c.bf16 %v1325, %v1325
        %v1330 = vld [vmem:[#allocation8] sm:$0xf]
        %v1331 = vld [vmem:[#allocation8 + $0x4] sm:$0xf]
        %v1332 = vld [vmem:[#allocation8 + $0x8] sm:$0xf]
        %v1333 = vld [vmem:[#allocation8 + $0xc] sm:$0xf]
        %v1334 = vld [vmem:[#allocation8 + $0x10] sm:$0xf]
        %v1335 = vld [vmem:[#allocation8 + $0x14] sm:$0xf]
        %v1336 = vld [vmem:[#allocation8 + $0x18] sm:$0xf]
        %v1337 = vld [vmem:[#allocation8 + $0x1c] sm:$0xf]
        %v1338 = vld [vmem:[#allocation8 + $0x20] sm:$0xf]
        %v1339 = vld [vmem:[#allocation8 + $0x24] sm:$0xf]
        %v1340 = vld [vmem:[#allocation8 + $0x28] sm:$0xf]
        %v1341 = vld [vmem:[#allocation8 + $0x2c] sm:$0xf]
        %v1342 = vld [vmem:[#allocation8 + $0x30] sm:$0xf]
        %v1343 = vld [vmem:[#allocation8 + $0x34] sm:$0xf]
        %v1344 = vld [vmem:[#allocation8 + $0x38] sm:$0xf]
        %v1345 = vld [vmem:[#allocation8 + $0x3c] sm:$0xf]
        %v1346 = vld [vmem:[#allocation8 + $0x40] sm:$0xf]
        %v1347 = vld [vmem:[#allocation8 + $0x44] sm:$0xf]
        %v1348 = vld [vmem:[#allocation8 + $0x48] sm:$0xf]
        %v1349 = vld [vmem:[#allocation8 + $0x4c] sm:$0xf]
        %v1350 = vld [vmem:[#allocation8 + $0x50] sm:$0xf]
        %v1351 = vld [vmem:[#allocation8 + $0x54] sm:$0xf]
        %v1352 = vld [vmem:[#allocation8 + $0x58] sm:$0xf]
        %v1353 = vld [vmem:[#allocation8 + $0x5c] sm:$0xf]
        %v1354 = vld [vmem:[#allocation8 + $0x60] sm:$0xf]
        %v1355 = vld [vmem:[#allocation8 + $0x64] sm:$0xf]
        %v1356 = vld [vmem:[#allocation8 + $0x68] sm:$0xf]
        %v1357 = vld [vmem:[#allocation8 + $0x6c] sm:$0xf]
        %v1358 = vld [vmem:[#allocation8 + $0x70] sm:$0xf]
        %v1359 = vld [vmem:[#allocation8 + $0x74] sm:$0xf]
        %v1360 = vld [vmem:[#allocation8 + $0x78] sm:$0xf]
        %v1361 = vld [vmem:[#allocation8 + $0x7c] sm:$0xf]
        %v1362 = vld [vmem:[%s6] sm:$0x1]
        %v1364 = vlaneseq
        %v1365 = vshrl.u32 %v1364, 7
        %v1366 = vsub.s32 0, %v1365
        %v1367 = vrot.slane %v1362, %v1366
        %v1401 = vunpack.c.l.b16 %v1330
        %v1402 = vunpack.c.l.b16 %v1331
        %v1403 = vunpack.c.l.b16 %v1332
        %v1404 = vunpack.c.l.b16 %v1333
        %v1405 = vunpack.c.l.b16 %v1334
        %v1406 = vunpack.c.l.b16 %v1335
        %v1407 = vunpack.c.l.b16 %v1336
        %v1408 = vunpack.c.l.b16 %v1337
        %v1409 = vunpack.c.l.b16 %v1338
        %v1410 = vunpack.c.l.b16 %v1339
        %v1411 = vunpack.c.l.b16 %v1340
        %v1412 = vunpack.c.l.b16 %v1341
        %v1413 = vunpack.c.l.b16 %v1342
        %v1414 = vunpack.c.l.b16 %v1343
        %v1415 = vunpack.c.l.b16 %v1344
        %v1416 = vunpack.c.l.b16 %v1345
        %v1417 = vunpack.c.l.b16 %v1346
        %v1418 = vunpack.c.l.b16 %v1347
        %v1419 = vunpack.c.l.b16 %v1348
        %v1420 = vunpack.c.l.b16 %v1349
        %v1421 = vunpack.c.l.b16 %v1350
        %v1422 = vunpack.c.l.b16 %v1351
        %v1423 = vunpack.c.l.b16 %v1352
        %v1424 = vunpack.c.l.b16 %v1353
        %v1425 = vunpack.c.l.b16 %v1354
        %v1426 = vunpack.c.l.b16 %v1355
        %v1427 = vunpack.c.l.b16 %v1356
        %v1428 = vunpack.c.l.b16 %v1357
        %v1429 = vunpack.c.l.b16 %v1358
        %v1430 = vunpack.c.l.b16 %v1359
        %v1431 = vunpack.c.l.b16 %v1360
        %v1432 = vunpack.c.l.b16 %v1361
        %v1433 = vpack.c.b16 %v1402, %v1401
        %v1434 = vpack.c.b16 %v1404, %v1403
        %v1435 = vpack.c.b16 %v1406, %v1405
        %v1436 = vpack.c.b16 %v1408, %v1407
        %v1437 = vpack.c.b16 %v1410, %v1409
        %v1438 = vpack.c.b16 %v1412, %v1411
        %v1439 = vpack.c.b16 %v1414, %v1413
        %v1440 = vpack.c.b16 %v1416, %v1415
        %v1441 = vpack.c.b16 %v1418, %v1417
        %v1442 = vpack.c.b16 %v1420, %v1419
        %v1443 = vpack.c.b16 %v1422, %v1421
        %v1444 = vpack.c.b16 %v1424, %v1423
        %v1445 = vpack.c.b16 %v1426, %v1425
        %v1446 = vpack.c.b16 %v1428, %v1427
        %v1447 = vpack.c.b16 %v1430, %v1429
        %v1448 = vpack.c.b16 %v1432, %v1431
        %1465 = vmatprep.subr.bf16.mxu0 0
        %1466 = vmatpush1.bf16.msra.mxu0 %v1433
        %1467 = vmatprep.subr.bf16.mxu0 0
        %1468 = vmatpush1.bf16.msra.mxu0 %v1434
        %1469 = vmatprep.subr.bf16.mxu0 0
        %1470 = vmatpush1.bf16.msra.mxu0 %v1435
        %1471 = vmatprep.subr.bf16.mxu0 0
        %1472 = vmatpush1.bf16.msra.mxu0 %v1436
        %1473 = vmatprep.subr.bf16.mxu0 0
        %1474 = vmatpush1.bf16.msra.mxu0 %v1437
        %1475 = vmatprep.subr.bf16.mxu0 0
        %1476 = vmatpush1.bf16.msra.mxu0 %v1438
        %1477 = vmatprep.subr.bf16.mxu0 0
        %1478 = vmatpush1.bf16.msra.mxu0 %v1439
        %1479 = vmatprep.subr.bf16.mxu0 0
        %1480 = vmatpush1.bf16.msra.mxu0 %v1440
        %1481 = vmatprep.subr.bf16.mxu0 0
        %1482 = vmatpush1.bf16.msra.mxu0 %v1441
        %1483 = vmatprep.subr.bf16.mxu0 0
        %1484 = vmatpush1.bf16.msra.mxu0 %v1442
        %1485 = vmatprep.subr.bf16.mxu0 0
        %1486 = vmatpush1.bf16.msra.mxu0 %v1443
        %1487 = vmatprep.subr.bf16.mxu0 0
        %1488 = vmatpush1.bf16.msra.mxu0 %v1444
        %1489 = vmatprep.subr.bf16.mxu0 0
        %1490 = vmatpush1.bf16.msra.mxu0 %v1445
        %1491 = vmatprep.subr.bf16.mxu0 0
        %1492 = vmatpush1.bf16.msra.mxu0 %v1446
        %1493 = vmatprep.subr.bf16.mxu0 0
        %1494 = vmatpush1.bf16.msra.mxu0 %v1447
        %1495 = vmatprep.subr.bf16.mxu0 0
        %1496 = vmatpush1.bf16.msra.mxu0 %v1448
        %1497 = vmatprep.mubr.bf16.mxu0 %v1327
        %1498 = vmatmul.mubr.bf16.gmra.mrb[0].mxu0 %v1326
        %v1499 = vpop.f32.mrb[0].mxu0
        %v1500 = vadd.f32 %v1367, %v1499
        %v1501 = vpop.f32.mrb[0].mxu0
        %v1502 = vpop.f32.mrb[0].mxu0
        %v1503 = vadd.f32 %v1367, %v1502
        %v1504 = vpop.f32.mrb[0].mxu0
        %1505 = vmatprep.mubr.bf16.mxu0 %v1329
        %1506 = vmatmul.mubr.bf16.gmra.mrb[0].mxu0 %v1328
        %v1507 = vpop.f32.mrb[0].mxu0
        %v1508 = vadd.f32 %v1367, %v1507
        %v1509 = vpop.f32.mrb[0].mxu0
        %v1510 = vpop.f32.mrb[0].mxu0
        %v1511 = vpop.f32.mrb[0].mxu0
        %1512 = vdwg.mxu0
        %v1513 = vmax.f32 %v1500, 0.0
        %v1514 = vmax.f32 %v1503, 0.0
        %v1515 = vmax.f32 %v1508, 0.0
        %v1516 = vpack.c.bf16 %v1514, %v1513
        %v1517 = vpack.c.bf16 %v1515, %v1515
        %v1518 = vld [vmem:[#allocation10] sm:$0xf]
        %v1519 = vld [vmem:[#allocation10 + $0x4] sm:$0xf]
        %v1520 = vld [vmem:[#allocation10 + $0x8] sm:$0xf]
        %v1521 = vld [vmem:[#allocation10 + $0xc] sm:$0xf]
        %v1522 = vld [vmem:[#allocation10 + $0x10] sm:$0xf]
        %v1523 = vld [vmem:[#allocation10 + $0x14] sm:$0xf]
        %v1524 = vld [vmem:[#allocation10 + $0x18] sm:$0xf]
        %v1525 = vld [vmem:[#allocation10 + $0x1c] sm:$0xf]
        %v1526 = vld [vmem:[#allocation10 + $0x20] sm:$0xf]
        %v1527 = vld [vmem:[#allocation10 + $0x24] sm:$0xf]
        %v1528 = vld [vmem:[#allocation10 + $0x28] sm:$0xf]
        %v1529 = vld [vmem:[#allocation10 + $0x2c] sm:$0xf]
        %v1530 = vld [vmem:[#allocation10 + $0x30] sm:$0xf]
        %v1531 = vld [vmem:[#allocation10 + $0x34] sm:$0xf]
        %v1532 = vld [vmem:[#allocation10 + $0x38] sm:$0xf]
        %v1533 = vld [vmem:[#allocation10 + $0x3c] sm:$0xf]
        %v1534 = vld [vmem:[%s8] sm:$0x1]
        %v1536 = vlaneseq
        %v1537 = vshrl.u32 %v1536, 7
        %v1538 = vsub.s32 0, %v1537
        %v1539 = vrot.slane %v1534, %v1538
        %v1557 = vunpack.c.l.b16 %v1518
        %v1558 = vunpack.c.l.b16 %v1519
        %v1559 = vunpack.c.l.b16 %v1520
        %v1560 = vunpack.c.l.b16 %v1521
        %v1561 = vunpack.c.l.b16 %v1522
        %v1562 = vunpack.c.l.b16 %v1523
        %v1563 = vunpack.c.l.b16 %v1524
        %v1564 = vunpack.c.l.b16 %v1525
        %v1565 = vunpack.c.l.b16 %v1526
        %v1566 = vunpack.c.l.b16 %v1527
        %v1567 = vunpack.c.l.b16 %v1528
        %v1568 = vunpack.c.l.b16 %v1529
        %v1569 = vunpack.c.l.b16 %v1530
        %v1570 = vunpack.c.l.b16 %v1531
        %v1571 = vunpack.c.l.b16 %v1532
        %v1572 = vunpack.c.l.b16 %v1533
        %v1573 = vpack.c.b16 %v1558, %v1557
        %v1574 = vpack.c.b16 %v1560, %v1559
        %v1575 = vpack.c.b16 %v1562, %v1561
        %v1576 = vpack.c.b16 %v1564, %v1563
        %v1577 = vpack.c.b16 %v1566, %v1565
        %v1578 = vpack.c.b16 %v1568, %v1567
        %v1579 = vpack.c.b16 %v1570, %v1569
        %v1580 = vpack.c.b16 %v1572, %v1571
        %1589 = vmatprep.subr.bf16.mxu0 0
        %1590 = vmatpush1.bf16.msra.mxu0 %v1573
        %1591 = vmatprep.subr.bf16.mxu0 0
        %1592 = vmatpush1.bf16.msra.mxu0 %v1574
        %1593 = vmatprep.subr.bf16.mxu0 0
        %1594 = vmatpush1.bf16.msra.mxu0 %v1575
        %1595 = vmatprep.subr.bf16.mxu0 0
        %1596 = vmatpush1.bf16.msra.mxu0 %v1576
        %1597 = vmatprep.subr.bf16.mxu0 0
        %1598 = vmatpush1.bf16.msra.mxu0 %v1577
        %1599 = vmatprep.subr.bf16.mxu0 0
        %1600 = vmatpush1.bf16.msra.mxu0 %v1578
        %1601 = vmatprep.subr.bf16.mxu0 0
        %1602 = vmatpush1.bf16.msra.mxu0 %v1579
        %1603 = vmatprep.subr.bf16.mxu0 0
        %1604 = vmatpush1.bf16.msra.mxu0 %v1580
        %1605 = vmatprep.subr.bf16.mxu0 0
        %1606 = vmatpush1.bf16.msra.mxu0 0
        %1607 = vmatprep.subr.bf16.mxu0 0
        %1608 = vmatpush1.bf16.msra.mxu0 0
        %1609 = vmatprep.subr.bf16.mxu0 0
        %1610 = vmatpush1.bf16.msra.mxu0 0
        %1611 = vmatprep.subr.bf16.mxu0 0
        %1612 = vmatpush1.bf16.msra.mxu0 0
        %1613 = vmatprep.subr.bf16.mxu0 0
        %1614 = vmatpush1.bf16.msra.mxu0 0
        %1615 = vmatprep.subr.bf16.mxu0 0
        %1616 = vmatpush1.bf16.msra.mxu0 0
        %1617 = vmatprep.subr.bf16.mxu0 0
        %1618 = vmatpush1.bf16.msra.mxu0 0
        %1619 = vmatprep.subr.bf16.mxu0 0
        %1620 = vmatpush1.bf16.msra.mxu0 0
        %1621 = vmatprep.mubr.bf16.mxu0 0
        %1622 = vmatmul.mubr.bf16.gmra.mrb[0].mxu0 %v1516
        %v1623 = vpop.f32.mrb[0].mxu0
        %v1624 = vadd.f32 %v1539, %v1623
        %v1625 = vpop.f32.mrb[0].mxu0
        %v1626 = vpop.f32.mrb[0].mxu0
        %v1627 = vadd.f32 %v1539, %v1626
        %v1628 = vpop.f32.mrb[0].mxu0
        %1629 = vmatprep.mubr.bf16.mxu0 0
        %1630 = vmatmul.mubr.bf16.gmra.mrb[0].mxu0 %v1517
        %v1631 = vpop.f32.mrb[0].mxu0
        %v1632 = vadd.f32 %v1539, %v1631
        %v1633 = vpop.f32.mrb[0].mxu0
        %v1634 = vpop.f32.mrb[0].mxu0
        %v1635 = vpop.f32.mrb[0].mxu0
        %1636 = vdwg.mxu0
        %v1637 = vmax.f32 %v1624, 0.0
        %v1638 = vmax.f32 %v1627, 0.0
        %v1639 = vmax.f32 %v1632, 0.0
        %v1640 = vpack.c.bf16 %v1638, %v1637
        %v1641 = vpack.c.bf16 %v1639, %v1639
        %v1642 = vld [vmem:[#allocation11] sm:$0xf]
        %v1643 = vld [vmem:[#allocation11 + $0x4] sm:$0xf]
        %v1644 = vld [vmem:[#allocation11 + $0x8] sm:$0xf]
        %v1645 = vld [vmem:[#allocation11 + $0xc] sm:$0xf]
        %v1646 = vld [vmem:[#allocation11 + $0x10] sm:$0xf]
        %v1647 = vld [vmem:[#allocation11 + $0x14] sm:$0xf]
        %v1648 = vld [vmem:[#allocation11 + $0x18] sm:$0xf]
        %v1649 = vld [vmem:[#allocation11 + $0x1c] sm:$0xf]
        %v1650 = vld [vmem:[#allocation11 + $0x20] sm:$0xf]
        %v1651 = vld [vmem:[#allocation11 + $0x24] sm:$0xf]
        %v1652 = vld [vmem:[#allocation11 + $0x28] sm:$0xf]
        %v1653 = vld [vmem:[#allocation11 + $0x2c] sm:$0xf]
        %v1654 = vld [vmem:[#allocation11 + $0x30] sm:$0xf]
        %v1655 = vld [vmem:[#allocation11 + $0x34] sm:$0xf]
        %v1656 = vld [vmem:[#allocation11 + $0x38] sm:$0xf]
        %v1657 = vld [vmem:[#allocation11 + $0x3c] sm:$0xf]
        %v1658 = vld [vmem:[%s10] sm:$0x1]
        %v1660 = vlaneseq
        %v1661 = vshrl.u32 %v1660, 7
        %v1662 = vsub.s32 0, %v1661
        %v1663 = vrot.slane %v1658, %v1662
        %v1681 = vunpack.c.l.b16 %v1642
        %v1682 = vunpack.c.l.b16 %v1643
        %v1683 = vunpack.c.l.b16 %v1644
        %v1684 = vunpack.c.l.b16 %v1645
        %v1685 = vunpack.c.l.b16 %v1646
        %v1686 = vunpack.c.l.b16 %v1647
        %v1687 = vunpack.c.l.b16 %v1648
        %v1688 = vunpack.c.l.b16 %v1649
        %v1689 = vunpack.c.l.b16 %v1650
        %v1690 = vunpack.c.l.b16 %v1651
        %v1691 = vunpack.c.l.b16 %v1652
        %v1692 = vunpack.c.l.b16 %v1653
        %v1693 = vunpack.c.l.b16 %v1654
        %v1694 = vunpack.c.l.b16 %v1655
        %v1695 = vunpack.c.l.b16 %v1656
        %v1696 = vunpack.c.l.b16 %v1657
        %v1697 = vpack.c.b16 %v1682, %v1681
        %v1698 = vpack.c.b16 %v1684, %v1683
        %v1699 = vpack.c.b16 %v1686, %v1685
        %v1700 = vpack.c.b16 %v1688, %v1687
        %v1701 = vpack.c.b16 %v1690, %v1689
        %v1702 = vpack.c.b16 %v1692, %v1691
        %v1703 = vpack.c.b16 %v1694, %v1693
        %v1704 = vpack.c.b16 %v1696, %v1695
        %1713 = vmatprep.subr.bf16.mxu0 0
        %1714 = vmatpush1.bf16.msra.mxu0 %v1697
        %1715 = vmatprep.subr.bf16.mxu0 0
        %1716 = vmatpush1.bf16.msra.mxu0 %v1698
        %1717 = vmatprep.subr.bf16.mxu0 0
        %1718 = vmatpush1.bf16.msra.mxu0 %v1699
        %1719 = vmatprep.subr.bf16.mxu0 0
        %1720 = vmatpush1.bf16.msra.mxu0 %v1700
        %1721 = vmatprep.subr.bf16.mxu0 0
        %1722 = vmatpush1.bf16.msra.mxu0 %v1701
        %1723 = vmatprep.subr.bf16.mxu0 0
        %1724 = vmatpush1.bf16.msra.mxu0 %v1702
        %1725 = vmatprep.subr.bf16.mxu0 0
        %1726 = vmatpush1.bf16.msra.mxu0 %v1703
        %1727 = vmatprep.subr.bf16.mxu0 0
        %1728 = vmatpush1.bf16.msra.mxu0 %v1704
        %1729 = vmatprep.subr.bf16.mxu0 0
        %1730 = vmatpush1.bf16.msra.mxu0 0
        %1731 = vmatprep.subr.bf16.mxu0 0
        %1732 = vmatpush1.bf16.msra.mxu0 0
        %1733 = vmatprep.subr.bf16.mxu0 0
        %1734 = vmatpush1.bf16.msra.mxu0 0
        %1735 = vmatprep.subr.bf16.mxu0 0
        %1736 = vmatpush1.bf16.msra.mxu0 0
        %1737 = vmatprep.subr.bf16.mxu0 0
        %1738 = vmatpush1.bf16.msra.mxu0 0
        %1739 = vmatprep.subr.bf16.mxu0 0
        %1740 = vmatpush1.bf16.msra.mxu0 0
        %1741 = vmatprep.subr.bf16.mxu0 0
        %1742 = vmatpush1.bf16.msra.mxu0 0
        %1743 = vmatprep.subr.bf16.mxu0 0
        %1744 = vmatpush1.bf16.msra.mxu0 0
        %1745 = vmatprep.mubr.bf16.mxu0 0
        %1746 = vmatmul.mubr.bf16.gmra.mrb[0].mxu0 %v1640
        %v1747 = vpop.f32.mrb[0].mxu0
        %v1748 = vadd.f32 %v1663, %v1747
        %v1749 = vpop.f32.mrb[0].mxu0
        %v1750 = vpop.f32.mrb[0].mxu0
        %v1751 = vadd.f32 %v1663, %v1750
        %v1752 = vpop.f32.mrb[0].mxu0
        %1753 = vmatprep.mubr.bf16.mxu0 0
        %1754 = vmatmul.mubr.bf16.gmra.mrb[0].mxu0 %v1641
        %v1755 = vpop.f32.mrb[0].mxu0
        %v1756 = vadd.f32 %v1663, %v1755
        %v1757 = vpop.f32.mrb[0].mxu0
        %v1758 = vpop.f32.mrb[0].mxu0
        %v1759 = vpop.f32.mrb[0].mxu0
        %1760 = vdwg.mxu0
        %v1761 = vpack.c.bf16 %v1751, %v1748
        %v1762 = vpack.c.bf16 %v1756, %v1756
        %v1765 = vunpack.c.l.b16 %v1761
        %v1766 = vunpack.c.h.b16 %v1761
        %v1767 = vunpack.c.l.b16 %v1762
        %v1768 = vpack.c.b16 %v1765, %v1765
        %v1769 = vpack.c.b16 %v1766, %v1766
        %v1770 = vpack.c.b16 %v1767, %v1767
        %1774 = vst [vmem:[%s477] sm:$0xf] %v1768
        %1775 = vst [vmem:[%s477 + $0x4] sm:$0xf] %v1769
        %1776 = vst [vmem:[%s477 + $0x8] sm:$0xf] %v1770
        %s1777 = sand.u32 %s275, 1
        %s1778 = scalar_lea.sflag [#allocation4], %s1777
        %s1779 = sand.u32 %s275, 1
        %s1780 = smul.addr %s1779, 12
        %s1781 = scalar_lea.vmem [#allocation13], %s1780
        // Predicated region
        $region89: #{tpu_custom_call.1} parent=63 // pred_check
          %p1782 = pneg %p285
        $region90: #{tpu_custom_call.1} parent=63 // pred_check_branch
          %1784 = sbr.rel (%p1782) target = $region92
        $region91: #{tpu_custom_call.1} parent=63 // pred_region
          %s1785 = smul.u32 3, %s31
          %s1787 = ssub.s32 192, 192
          %1788 = vsyncadd %s1778, %s1787
          %s1789 = smul.addr %s1785, 64
          %s1790 = scalar_lea.hbm %s11, %s1789
          %s1791 = sshll.u32 %s1781, 4
          %s1792 = int_to_ptr.vmem [resolvable:$true] %s1791
          %1797 = dma.vmem_to_hbm [thread:$0]  %s1792, 192, %s1790, %s1778, 64, 64, 4
        $region92: #{tpu_custom_call.1} parent=63 // pred_fallthru
          _
      $region64: #{tpu_custom_call.1} parent=5 // pred_fallthru
        _
      %p1798 = scmp.le.s32.totalorder 2, %s26
      // Predicated region
      $region93: #{tpu_custom_call.1} parent=5 // pred_check
        %p1799 = pneg %p1798
      $region94: #{tpu_custom_call.1} parent=5 // pred_check_branch
        %1801 = sbr.rel (%p1799) target = $region96
      $region95: #{tpu_custom_call.1} parent=5 // pred_region
        %s1802 = ssub.s32 %s26, 2
        // Predicated region
        $region97: #{tpu_custom_call.1} parent=95 // pred_check
          %p1803 = pneg %p291
        $region98: #{tpu_custom_call.1} parent=95 // pred_check_branch
          %1805 = sbr.rel (%p1803) target = $region100
        $region99: #{tpu_custom_call.1} parent=95 // pred_region
          %s1806 = sand.u32 %s276, 1
          %s1807 = scalar_lea.sflag [#allocation4], %s1806
          %s1808 = sand.u32 %s276, 1
          %s1809 = smul.addr %s1808, 12
          %s1810 = scalar_lea.vmem [#allocation13], %s1809
          %1811 = dma.done %s1807, 192
        $region100: #{tpu_custom_call.1} parent=95 // pred_fallthru
          _
      $region96: #{tpu_custom_call.1} parent=5 // pred_fallthru
        _
    $region6: #{tpu_custom_call.1} parent=1 // loop_footer
      %s30 = sadd.s32 1, %s26
    $region7: #{tpu_custom_call.1} parent=1 // loop_footer_branch
      %25 = sbr.rel target = $region3
    $region8: #{tpu_custom_call.1} parent=1 // loop_exit
      _
    %1812 = vsyncpa [#allocation3], 1
    %s1813 = scalar_lea.sflag [#allocation3], 1
    %1814 = vsyncpa %s1813, 1
    %1815 = vsyncpa [#allocation6], 1
    %1816 = vsyncpa [#allocation9], 1
    %1817 = vsyncpa [#allocation12], 1
    %1818 = vsyncpa [#allocation4], 1
    %s1819 = scalar_lea.sflag [#allocation4], 1
    %1820 = vsyncpa %s1819, 1

</llo_original>
